<compile_context>
chip_gen: v6e
topology: v6e:2x2x1
jax: 0.10.0
libtpu: 0.0.40
codegen_flags: <defaults>
</compile_context>

<pallas_src>
import numpy as np

import jax
import jax.numpy as jnp
from jax.experimental import pallas as pl
from jax.experimental.pallas import tpu as pltpu


def _wvl_kernel(x_ref, tgt_ref, mask_ref, sel_ref, out_ref,
                prev_ref, num_ref, cnt_ref):
    """Grid = (B/b_blk, T/t_blk); T is the innermost (reduction) axis.

    x_ref, tgt_ref : (b_blk, t_blk, D)  input dtype (f32 or bf16) in VMEM
    mask_ref       : (b_blk, t_blk)     f32
    sel_ref        : (D, G_pad)         f32 constant group-selection matrix
    out_ref        : (b_blk, 1)         f32 per-row loss (written at last T step)
    prev_ref       : (b_blk, 1, D)      f32 last frame of the previous T block
    num_ref/cnt_ref: (b_blk, 1)         f32 masked-loss / mask-count accumulators
    """
    t_idx = pl.program_id(1)
    n_t = pl.num_programs(1)

    # Stream in native dtype; compute in f32 (v5e's VPU has no bf16 ALUs).
    diff = x_ref[...].astype(jnp.float32) - tgt_ref[...].astype(jnp.float32)
    b_blk, t_blk, _ = diff.shape

    @pl.when(t_idx == 0)
    def _init():
        num_ref[...] = jnp.zeros_like(num_ref)
        cnt_ref[...] = jnp.zeros_like(cnt_ref)
        # Makes the (masked-out) "velocity" of the very first frame exactly 0.
        prev_ref[...] = diff[:, 0:1, :]

    # Velocity of (pred - target): dv[t] = diff[t] - diff[t-1].  The shifted
    # operand is built at the full t_blk extent so every downstream intermediate
    # stays (8,128)-aligned (no T-1 shaped tensors); the one-frame carry handles
    # block boundaries.  (pltpu.roll along the sublane axis would avoid the
    # concat copy entirely; the copy is VMEM-local and cheap vs. HBM streaming.)
    shifted = jnp.concatenate([prev_ref[...], diff[:, :t_blk - 1, :]], axis=1)
    dv = diff - shifted                                    # (b_blk, t_blk, D)

    # Carry the last frame of this block into the next T step.
    prev_ref[...] = diff[:, t_blk - 1:t_blk, :]

    # All 2J+1 group sums in one batched MXU matmul against the constant
    # selection matrix; sqrt then yields w_g * ||group_g||_2 because the squared
    # weights (rot_scale/J, pos_scale/J, trans_scale) are folded into `sel`.
    d2 = dv * dv
    g_pad = sel_ref.shape[1]
    sel = jnp.broadcast_to(sel_ref[...], (b_blk, sel_ref.shape[0], g_pad))
    gs = jax.lax.dot_general(
        d2, sel,
        dimension_numbers=(((2,), (1,)), ((0,), (0,))),
        precision=jax.lax.Precision.HIGHEST,
        preferred_element_type=jnp.float32)                # (b_blk, t_blk, g_pad)
    pf = jnp.sum(jnp.sqrt(gs), axis=-1)                    # (b_blk, t_blk)

    m = mask_ref[...]
    # The first frame of the whole sequence has no velocity -> drop it from both
    # the numerator and the entry count (mirrors mask[:, 1:] in the reference).
    t_pos = jax.lax.broadcasted_iota(jnp.int32, m.shape, 1)
    m = jnp.where(jnp.logical_and(t_idx == 0, t_pos == 0), 0.0, m)

    num_ref[...] += jnp.sum(pf * m, axis=-1, keepdims=True)
    cnt_ref[...] += jnp.sum(m, axis=-1, keepdims=True)

    @pl.when(t_idx == n_t - 1)
    def _finalize():
        # NOTE: a fully padded row (cnt == 0) yields inf/nan, same as the
        # PyTorch reference.  sqrt(0) is fine for the forward pass only.
        out_ref[...] = num_ref[...] / cnt_ref[...]


def _build_selection(num_joints, rot_scale, pos_scale, trans_scale, g_pad=128):
    """(D, G_pad) 0/weight^2 matrix: column g selects the channels of group g."""
    J = num_joints
    D = 9 * J + 3
    n_groups = 2 * J + 1
    gp = max(g_pad, ((n_groups + 127) // 128) * 128)   # lane-dense output width
    sel = np.zeros((D, gp), dtype=np.float32)
    wr = (rot_scale / J) ** 2
    wp = (pos_scale / J) ** 2
    wt = trans_scale ** 2
    for j in range(J):
        sel[j * 6:(j + 1) * 6, j] = wr                 # rotation joints (6 ch)
    off = 6 * J
    for j in range(J):
        sel[off + j * 3:off + (j + 1) * 3, J + j] = wp  # position joints (3 ch)
    sel[9 * J:9 * J + 3, 2 * J] = wt                    # trans (3 ch)
    return jnp.asarray(sel)


def _pick_t_block(T, b_blk, D, itemsize, target_bytes=1 << 20):
    # t_blk must divide T and be either T or a multiple of 128 (mask lane rule).
    if T % 128 != 0:
        return T
    cands = [c for c in range(128, T + 1, 128) if T % c == 0]
    fit = [c for c in cands if b_blk * c * D * itemsize <= target_bytes]
    return max(fit) if fit else min(cands)


def weighted_velocity_loss(x, target, padding_mask, *, num_joints,
                           rot_scale=1.0, pos_scale=1.0, trans_scale=1.0,
                           b_blk=None, t_blk=None):
    B, T, D = x.shape
    assert target.shape == (B, T, D)
    assert padding_mask.shape == (B, T)
    assert num_joints >= 1 and D == 9 * num_joints + 3, \
        "D must be J*6 (rot) + J*3 (pos) + 3 (trans)"
    assert min(rot_scale, pos_scale, trans_scale) >= 0.0

    mask = padding_mask.astype(jnp.float32)
    sel = _build_selection(num_joints, float(rot_scale), float(pos_scale),
                           float(trans_scale))
    g_pad = sel.shape[1]

    if b_blk is None:
        b_blk = 8 if B % 8 == 0 else B
    b_blk = min(b_blk, B)
    assert B % b_blk == 0 and (b_blk == B or b_blk % 8 == 0)

    itemsize = x.dtype.itemsize
    if t_blk is None:
        t_blk = _pick_t_block(T, b_blk, D, itemsize)
    assert T % t_blk == 0 and (t_blk == T or t_blk % 128 == 0)

    grid = (B // b_blk, T // t_blk)

    # VMEM budget: double-buffered inputs + f32 temporaries, clamped for v7x.
    in_blk = b_blk * t_blk * D * itemsize
    f32_blk = b_blk * t_blk * D * 4
    gs_blk = b_blk * t_blk * g_pad * 4
    est = (4 * in_blk + 2 * b_blk * t_blk * 4 + (2 + b_blk) * D * g_pad * 4
           + 6 * f32_blk + 2 * gs_blk + b_blk * (D + 4) * 4 + (2 << 20))
    vmem_limit = int(min(max(est, 16 << 20), 48 << 20))

    grid_spec = pltpu.PrefetchScalarGridSpec(
        num_scalar_prefetch=0,
        grid=grid,
        in_specs=[
            pl.BlockSpec((b_blk, t_blk, D), lambda b, t: (b, t, 0)),   # x
            pl.BlockSpec((b_blk, t_blk, D), lambda b, t: (b, t, 0)),   # target
            pl.BlockSpec((b_blk, t_blk), lambda b, t: (b, t)),         # mask
            pl.BlockSpec((D, g_pad), lambda b, t: (0, 0)),             # selection
        ],
        out_specs=pl.BlockSpec((b_blk, 1), lambda b, t: (b, 0)),
        scratch_shapes=[
            pltpu.VMEM((b_blk, 1, D), jnp.float32),   # previous-frame carry
            pltpu.VMEM((b_blk, 1), jnp.float32),      # masked-loss accumulator
            pltpu.VMEM((b_blk, 1), jnp.float32),      # mask-count accumulator
        ],
    )

    out = pl.pallas_call(
        _wvl_kernel,
        out_shape=jax.ShapeDtypeStruct((B, 1), jnp.float32),
        grid_spec=grid_spec,
        compiler_params=pltpu.CompilerParams(
            dimension_semantics=("parallel", "arbitrary"),
            vmem_limit_bytes=vmem_limit),
    )(x, target, mask, sel)
    return out[:, 0]


# ---------------- pure-JAX reference (mirrors the PyTorch module) ----------------
def _recover_from_vector_ref(v, num_joints):
    J = num_joints
    return {
        "rotation": v[..., :J * 6].reshape(*v.shape[:-1], J, 6),
        "position": v[..., J * 6:J * 9].reshape(*v.shape[:-1], J, 3),
        "trans": v[..., J * 9:J * 9 + 3],
    }


def _masked_l2_ref(a, b, mask):
    l2 = jnp.linalg.norm(a - b, axis=-1)
    if l2.ndim > 2:
        l2 = l2.mean(axis=tuple(range(2, l2.ndim)))
    m_l2 = jnp.sum(l2 * mask, axis=tuple(range(1, l2.ndim)))
    num_entries = jnp.sum(mask, axis=tuple(range(1, mask.ndim)))
    return m_l2 / num_entries


def _loss_ref(x, target, mask, num_joints, rot_scale, pos_scale, trans_scale):
    pred = _recover_from_vector_ref(x[:, 1:] - x[:, :-1], num_joints)
    gt = _recover_from_vector_ref(target[:, 1:] - target[:, :-1], num_joints)
    m = mask[:, 1:]
    return (rot_scale * _masked_l2_ref(pred["rotation"], gt["rotation"], m)
            + pos_scale * _masked_l2_ref(pred["position"], gt["position"], m)
            + trans_scale * _masked_l2_ref(pred["trans"], gt["trans"], m))


if __name__ == "__main__":
    root = jax.random.PRNGKey(0)

    def run_case(case, B, T, J, rot_s, pos_s, trans_s, dtype=jnp.float32,
                 b_blk=None, t_blk=None):
        D = 9 * J + 3
        key = jax.random.fold_in(root, case)
        kx, kt, kl = jax.random.split(key, 3)
        x = jax.random.normal(kx, (B, T, D), dtype=jnp.float32).astype(dtype)
        target = jax.random.normal(kt, (B, T, D), dtype=jnp.float32).astype(dtype)
        lengths = jax.random.randint(kl, (B,), 2, T + 1)          # >= 2 frames
        padding_mask = (jnp.arange(T)[None, :] < lengths[:, None]).astype(jnp.float32)

        out = weighted_velocity_loss(
            x, target, padding_mask, num_joints=J,
            rot_scale=rot_s, pos_scale=pos_s, trans_scale=trans_s,
            b_blk=b_blk, t_blk=t_blk)
        out = jax.block_until_ready(out)

        ref = _loss_ref(x.astype(jnp.float32), target.astype(jnp.float32),
                        padding_mask, J, rot_s, pos_s, trans_s)
        assert out.shape == (B,)
        assert jnp.allclose(out, ref, rtol=2e-4, atol=1e-5), (case, out, ref)

    # 1) small single-block path (grid = (1, 1))
    run_case(0, B=2, T=16, J=4, rot_s=1.0, pos_s=1.0, trans_s=1.0)
    # 2) tiled path: batch-parallel grid + T reduction with cross-block frame
    #    carry and accumulators (grid = (2, 2))
    run_case(1, B=16, T=256, J=2, rot_s=0.5, pos_s=2.0, trans_s=1.5,
             b_blk=8, t_blk=128)
    # 3) bf16 streaming path (inputs stay bf16 in HBM, f32 compute in VMEM)
    run_case(2, B=8, T=128, J=4, rot_s=1.0, pos_s=0.5, trans_s=2.0,
             dtype=jnp.bfloat16)

    print("KERNEL_OK")
</pallas_src>

<mosaic_0001>
module attributes {stable_mosaic.version = 11 : i64} {
  func.func @_wvl_kernel(%arg0: i32, %arg1: i32, %arg2: memref<2x16x39xf32, #tpu.memory_space<vmem>>, %arg3: memref<2x16x39xf32, #tpu.memory_space<vmem>>, %arg4: memref<2x16xf32, #tpu.memory_space<vmem>>, %arg5: memref<39x128xf32, #tpu.memory_space<vmem>>, %arg6: memref<2x1xf32, #tpu.memory_space<vmem>>, %arg7: memref<2x1x39xf32, #tpu.memory_space<vmem>>, %arg8: memref<2x1xf32, #tpu.memory_space<vmem>>, %arg9: memref<2x1xf32, #tpu.memory_space<vmem>>) attributes {dimension_semantics = [#tpu.dimension_semantics<parallel>, #tpu.dimension_semantics<arbitrary>], iteration_bounds = array<i64: 1, 1>, scalar_prefetch = 0 : i64, scratch_operands = 3 : i64, tpu.core_type = #tpu.core_type<tc>, window_params = [{transform_indices = @transform_0, window_bounds = array<i64: 2, 16, 39>}, {transform_indices = @transform_1, window_bounds = array<i64: 2, 16, 39>}, {transform_indices = @transform_2, window_bounds = array<i64: 2, 16>}, {pipeline_mode = #tpu.pipeline_mode<synchronous>, transform_indices = @transform_3, window_bounds = array<i64: 39, 128>}, {transform_indices = @transform_4, window_bounds = array<i64: 2, 1>}]} {
    %c0 = arith.constant 0 : index
    %c0_0 = arith.constant 0 : index
    %c0_1 = arith.constant 0 : index
    %0 = vector.load %arg2[%c0, %c0_0, %c0_1] : memref<2x16x39xf32, #tpu.memory_space<vmem>>, vector<2x16x39xf32>
    %c0_2 = arith.constant 0 : index
    %c0_3 = arith.constant 0 : index
    %c0_4 = arith.constant 0 : index
    %1 = vector.load %arg3[%c0_2, %c0_3, %c0_4] : memref<2x16x39xf32, #tpu.memory_space<vmem>>, vector<2x16x39xf32>
    %2 = arith.subf %0, %1 : vector<2x16x39xf32>
    %c0_i32 = arith.constant 0 : i32
    %3 = arith.cmpi eq, %arg1, %c0_i32 : i32
    %4 = arith.extui %3 : i1 to i32
    %c0_i32_5 = arith.constant 0 : i32
    %5 = arith.cmpi ne, %4, %c0_i32_5 : i32
    scf.if %5 {
      %cst_32 = arith.constant 0.000000e+00 : f32
      %42 = vector.broadcast %cst_32 : f32 to vector<2x1xf32>
      %c0_33 = arith.constant 0 : index
      %c0_34 = arith.constant 0 : index
      %43 = vector.load %arg8[%c0_33, %c0_34] : memref<2x1xf32, #tpu.memory_space<vmem>>, vector<2x1xf32>
      tpu.vector_store %arg8[%c0_33, %c0_34], %42 {strides = array<i32>} : memref<2x1xf32, #tpu.memory_space<vmem>>, vector<2x1xf32>,
      %cst_35 = arith.constant 0.000000e+00 : f32
      %44 = vector.broadcast %cst_35 : f32 to vector<2x1xf32>
      %c0_36 = arith.constant 0 : index
      %c0_37 = arith.constant 0 : index
      %45 = vector.load %arg9[%c0_36, %c0_37] : memref<2x1xf32, #tpu.memory_space<vmem>>, vector<2x1xf32>
      tpu.vector_store %arg9[%c0_36, %c0_37], %44 {strides = array<i32>} : memref<2x1xf32, #tpu.memory_space<vmem>>, vector<2x1xf32>,
      %46 = vector.extract_strided_slice %2 {offsets = [0, 0, 0], sizes = [2, 1, 39], strides = [1, 1, 1]} : vector<2x16x39xf32> to vector<2x1x39xf32>
      %c0_38 = arith.constant 0 : index
      %c0_39 = arith.constant 0 : index
      %c0_40 = arith.constant 0 : index
      %47 = vector.load %arg7[%c0_38, %c0_39, %c0_40] : memref<2x1x39xf32, #tpu.memory_space<vmem>>, vector<2x1x39xf32>
      tpu.vector_store %arg7[%c0_38, %c0_39, %c0_40], %46 {strides = array<i32>} : memref<2x1x39xf32, #tpu.memory_space<vmem>>, vector<2x1x39xf32>,
    } else {
    }
    %c0_6 = arith.constant 0 : index
    %c0_7 = arith.constant 0 : index
    %c0_8 = arith.constant 0 : index
    %6 = vector.load %arg7[%c0_6, %c0_7, %c0_8] : memref<2x1x39xf32, #tpu.memory_space<vmem>>, vector<2x1x39xf32>
    %7 = vector.extract_strided_slice %2 {offsets = [0, 0, 0], sizes = [2, 15, 39], strides = [1, 1, 1]} : vector<2x16x39xf32> to vector<2x15x39xf32>
    %8 = tpu.concatenate %6, %7 in 1 : vector<2x1x39xf32>, vector<2x15x39xf32> -> vector<2x16x39xf32>
    %9 = arith.subf %2, %8 : vector<2x16x39xf32>
    %10 = vector.extract_strided_slice %2 {offsets = [0, 15, 0], sizes = [2, 1, 39], strides = [1, 1, 1]} : vector<2x16x39xf32> to vector<2x1x39xf32>
    %c0_9 = arith.constant 0 : index
    %c0_10 = arith.constant 0 : index
    %c0_11 = arith.constant 0 : index
    %11 = vector.load %arg7[%c0_9, %c0_10, %c0_11] : memref<2x1x39xf32, #tpu.memory_space<vmem>>, vector<2x1x39xf32>
    tpu.vector_store %arg7[%c0_9, %c0_10, %c0_11], %10 {strides = array<i32>} : memref<2x1x39xf32, #tpu.memory_space<vmem>>, vector<2x1x39xf32>,
    %12 = arith.mulf %9, %9 : vector<2x16x39xf32>
    %c0_12 = arith.constant 0 : index
    %c0_13 = arith.constant 0 : index
    %13 = vector.load %arg5[%c0_12, %c0_13] : memref<39x128xf32, #tpu.memory_space<vmem>>, vector<39x128xf32>
    %14 = vector.shape_cast %13 : vector<39x128xf32> to vector<1x39x128xf32>
    %15 = vector.broadcast %14 : vector<1x39x128xf32> to vector<2x39x128xf32>
    %cst = arith.constant dense<0.000000e+00> : vector<2x16x128xf32>
    %16 = tpu.matmul %12, %15, %cst {dimension_numbers = #tpu.dot_dimension_numbers<[2], [1], [1], [2], [0, 0, 0, 1, 1, 2], [0], [0]>, precision = #tpu.contract_precision<fp32>} : vector<2x16x39xf32>, vector<2x39x128xf32>, vector<2x16x128xf32> -> vector<2x16x128xf32>
    %17 = math.sqrt %16 : vector<2x16x128xf32>
    %cst_14 = arith.constant dense<0.000000e+00> : vector<2x16xf32>
    %18 = vector.multi_reduction <add>, %17, %cst_14 [2] : vector<2x16x128xf32> to vector<2x16xf32>
    %c0_15 = arith.constant 0 : index
    %c0_16 = arith.constant 0 : index
    %19 = vector.load %arg4[%c0_15, %c0_16] : memref<2x16xf32, #tpu.memory_space<vmem>>, vector<2x16xf32>
    %20 = tpu.iota {dimensions = array<i32: 1>} : vector<2x16xi32>
    %c0_i32_17 = arith.constant 0 : i32
    %21 = arith.cmpi eq, %arg1, %c0_i32_17 : i32
    %c0_i32_18 = arith.constant 0 : i32
    %22 = vector.broadcast %c0_i32_18 : i32 to vector<2x16xi32>
    %23 = arith.cmpi eq, %20, %22 : vector<2x16xi32>
    %24 = vector.broadcast %21 : i1 to vector<2x16xi1>
    %25 = arith.andi %24, %23 : vector<2x16xi1>
    %cst_19 = arith.constant 0.000000e+00 : f32
    %26 = vector.broadcast %cst_19 : f32 to vector<2x16xf32>
    %27 = arith.select %25, %26, %19 : vector<2x16xi1>, vector<2x16xf32>
    %c0_20 = arith.constant 0 : index
    %c0_21 = arith.constant 0 : index
    %28 = vector.load %arg8[%c0_20, %c0_21] : memref<2x1xf32, #tpu.memory_space<vmem>>, vector<2x1xf32>
    %29 = arith.mulf %18, %27 : vector<2x16xf32>
    %cst_22 = arith.constant dense<0.000000e+00> : vector<2xf32>
    %30 = vector.multi_reduction <add>, %29, %cst_22 [1] : vector<2x16xf32> to vector<2xf32>
    %31 = vector.shape_cast %30 : vector<2xf32> to vector<2x1xf32>
    %32 = arith.addf %28, %31 : vector<2x1xf32>
    %c0_23 = arith.constant 0 : index
    %c0_24 = arith.constant 0 : index
    %33 = vector.load %arg8[%c0_23, %c0_24] : memref<2x1xf32, #tpu.memory_space<vmem>>, vector<2x1xf32>
    tpu.vector_store %arg8[%c0_23, %c0_24], %32 {strides = array<i32>} : memref<2x1xf32, #tpu.memory_space<vmem>>, vector<2x1xf32>,
    %c0_25 = arith.constant 0 : index
    %c0_26 = arith.constant 0 : index
    %34 = vector.load %arg9[%c0_25, %c0_26] : memref<2x1xf32, #tpu.memory_space<vmem>>, vector<2x1xf32>
    %cst_27 = arith.constant dense<0.000000e+00> : vector<2xf32>
    %35 = vector.multi_reduction <add>, %27, %cst_27 [1] : vector<2x16xf32> to vector<2xf32>
    %36 = vector.shape_cast %35 : vector<2xf32> to vector<2x1xf32>
    %37 = arith.addf %34, %36 : vector<2x1xf32>
    %c0_28 = arith.constant 0 : index
    %c0_29 = arith.constant 0 : index
    %38 = vector.load %arg9[%c0_28, %c0_29] : memref<2x1xf32, #tpu.memory_space<vmem>>, vector<2x1xf32>
    tpu.vector_store %arg9[%c0_28, %c0_29], %37 {strides = array<i32>} : memref<2x1xf32, #tpu.memory_space<vmem>>, vector<2x1xf32>,
    %c0_i32_30 = arith.constant 0 : i32
    %39 = arith.cmpi eq, %arg1, %c0_i32_30 : i32
    %40 = arith.extui %39 : i1 to i32
    %c0_i32_31 = arith.constant 0 : i32
    %41 = arith.cmpi ne, %40, %c0_i32_31 : i32
    scf.if %41 {
      %c0_32 = arith.constant 0 : index
      %c0_33 = arith.constant 0 : index
      %42 = vector.load %arg8[%c0_32, %c0_33] : memref<2x1xf32, #tpu.memory_space<vmem>>, vector<2x1xf32>
      %c0_34 = arith.constant 0 : index
      %c0_35 = arith.constant 0 : index
      %43 = vector.load %arg9[%c0_34, %c0_35] : memref<2x1xf32, #tpu.memory_space<vmem>>, vector<2x1xf32>
      %44 = arith.divf %42, %43 : vector<2x1xf32>
      %c0_36 = arith.constant 0 : index
      %c0_37 = arith.constant 0 : index
      %45 = vector.load %arg6[%c0_36, %c0_37] : memref<2x1xf32, #tpu.memory_space<vmem>>, vector<2x1xf32>
      tpu.vector_store %arg6[%c0_36, %c0_37], %44 {strides = array<i32>} : memref<2x1xf32, #tpu.memory_space<vmem>>, vector<2x1xf32>,
    } else {
    }
    return
  }
  func.func @transform_0(%arg0: i32, %arg1: i32) -> (i32, i32, i32) {
    %c0_i32 = arith.constant 0 : i32
    %c0_i32_0 = arith.constant 0 : i32
    return %arg0, %arg1, %c0_i32 : i32, i32, i32
  }
  func.func @transform_1(%arg0: i32, %arg1: i32) -> (i32, i32, i32) {
    %c0_i32 = arith.constant 0 : i32
    %c0_i32_0 = arith.constant 0 : i32
    return %arg0, %arg1, %c0_i32 : i32, i32, i32
  }
  func.func @transform_2(%arg0: i32, %arg1: i32) -> (i32, i32) {
    %c0_i32 = arith.constant 0 : i32
    return %arg0, %arg1 : i32, i32
  }
  func.func @transform_3(%arg0: i32, %arg1: i32) -> (i32, i32) {
    %c0_i32 = arith.constant 0 : i32
    %c0_i32_0 = arith.constant 0 : i32
    %c0_i32_1 = arith.constant 0 : i32
    return %c0_i32, %c0_i32_0 : i32, i32
  }
  func.func @transform_4(%arg0: i32, %arg1: i32) -> (i32, i32) {
    %c0_i32 = arith.constant 0 : i32
    %c0_i32_0 = arith.constant 0 : i32
    return %arg0, %c0_i32 : i32, i32
  }
}

</mosaic_0001>

<llo_original>
// kernel: tpu_custom_call.1
$region0: #{tpu_custom_call.1}
  #allocation0 [shape = 'u32[]', space=smem, size = 0x4, offset = 0x4, fixed_abs, tag = 'smem constant byte address 0x4 - core index']
  #allocation1 [shape = 'u32[144,128]{1,0:T(1,128)}', space=vmem, size = 0x12000, scoped, tag = 'internal scratch']
  #allocation2 [shape = 'f32[2,1,39]{2,1,0:T(1,128)}', space=vmem, size = 0x400, scoped, tag = 'scratch operand']
  #allocation3 [shape = 'f32[2,1]{1,0:T(2,128)}', space=vmem, size = 0x400, scoped, tag = 'scratch operand']
  #allocation4 [shape = 'f32[2,1]{1,0:T(2,128)}', space=vmem, size = 0x400, scoped, tag = 'scratch operand']
  %s0 = inlined_call_operand.hbm [shape: f32[2,16,39], index: 0, kind: input, shape index: {}]
  %s1 = inlined_call_operand.hbm [shape: f32[2,16,39], index: 1, kind: input, shape index: {}]
  %s2 = inlined_call_operand.vmem [shape: f32[2,16], index: 2, kind: input, shape index: {}]
  %s3 = inlined_call_operand.hbm [shape: f32[39,128], index: 3, kind: input, shape index: {}]
  %s4 = inlined_call_operand.vmem [shape: f32[2,1], index: 4, kind: output, shape index: {}]
  %s5 = sld [smem:[#allocation0]]
  $region46: #{tpu_custom_call.1} parent=0
    _
  %s7 = ssub.s32 1, %s5
  %s8 = scalar_select 0, %s7, %s5
  $region1: #{tpu_custom_call.1} parent=0
    #allocation5 [shape = 'u8[16384]{0}', space=vmem, size = 0x4000, scoped, tag = 'input window, operand 0, single buffered']
    #allocation6 [shape = 's32[1]{0}', space=sflag, size = 0x4, scoped, tag = 'scoped memory for tpu_custom_call.1']
    #allocation7 [shape = 'u8[16384]{0}', space=vmem, size = 0x4000, scoped, tag = 'input window, operand 1, single buffered']
    #allocation8 [shape = 's32[1]{0}', space=sflag, size = 0x4, scoped, tag = 'scoped memory for tpu_custom_call.1']
    #allocation9 [shape = 'u8[20480]{0}', space=vmem, size = 0x5000, scoped, tag = 'input window, operand 3, single buffered']
    %9 = vsyncpa [#allocation6], 0
    %10 = vsyncpa [#allocation8], 0
    // Predicated region
    $region2: #{tpu_custom_call.1} parent=1 // pred_check
      _
    $region3: #{tpu_custom_call.1} parent=1 // pred_check_branch
      %12 = sbr.rel (0) target = $region5
    $region4: #{tpu_custom_call.1} parent=1 // pred_region
      %s14 = ssub.s32 512, 512
      %15 = vsyncadd [#allocation6], %s14
      %s16 = sshll.u32 [#allocation5], 4
      %s17 = int_to_ptr.vmem [resolvable:$true] %s16
      %22 = dma.hbm_to_vmem [thread:$0]  %s0, 512, %s17, [#allocation6], 128, 128, 8
    $region5: #{tpu_custom_call.1} parent=1 // pred_fallthru
      _
    // Predicated region
    $region6: #{tpu_custom_call.1} parent=1 // pred_check
      _
    $region7: #{tpu_custom_call.1} parent=1 // pred_check_branch
      %24 = sbr.rel (0) target = $region9
    $region8: #{tpu_custom_call.1} parent=1 // pred_region
      %s26 = ssub.s32 512, 512
      %27 = vsyncadd [#allocation8], %s26
      %s28 = sshll.u32 [#allocation7], 4
      %s29 = int_to_ptr.vmem [resolvable:$true] %s28
      %34 = dma.hbm_to_vmem [thread:$0]  %s1, 512, %s29, [#allocation8], 128, 128, 8
    $region9: #{tpu_custom_call.1} parent=1 // pred_fallthru
      _
    // Predicated region
    $region10: #{tpu_custom_call.1} parent=1 // pred_check
      _
    $region11: #{tpu_custom_call.1} parent=1 // pred_check_branch
      %36 = sbr.rel (0) target = $region13
    $region12: #{tpu_custom_call.1} parent=1 // pred_region
      _
    $region13: #{tpu_custom_call.1} parent=1 // pred_fallthru
      _
    // Predicated region
    $region14: #{tpu_custom_call.1} parent=1 // pred_check
      _
    $region15: #{tpu_custom_call.1} parent=1 // pred_check_branch
      %38 = sbr.rel (0) target = $region17
    $region16: #{tpu_custom_call.1} parent=1 // pred_region
      %s40 = ssub.s32 640, 640
      %41 = vsyncadd [#allocation8], %s40
      %s42 = sshll.u32 [#allocation9], 4
      %s43 = int_to_ptr.vmem [resolvable:$true] %s42
      %48 = dma.hbm_to_vmem [thread:$0]  %s3, 640, %s43, [#allocation8], 128, 128, 8
    $region17: #{tpu_custom_call.1} parent=1 // pred_fallthru
      _
    // Predicated region
    $region18: #{tpu_custom_call.1} parent=1 // pred_check
      _
    $region19: #{tpu_custom_call.1} parent=1 // pred_check_branch
      %50 = sbr.rel (0) target = $region21
    $region20: #{tpu_custom_call.1} parent=1 // pred_region
      %51 = dma.done [#allocation6], 512
    $region21: #{tpu_custom_call.1} parent=1 // pred_fallthru
      _
    // Predicated region
    $region22: #{tpu_custom_call.1} parent=1 // pred_check
      _
    $region23: #{tpu_custom_call.1} parent=1 // pred_check_branch
      %53 = sbr.rel (0) target = $region25
    $region24: #{tpu_custom_call.1} parent=1 // pred_region
      %54 = dma.done [#allocation8], 512
    $region25: #{tpu_custom_call.1} parent=1 // pred_fallthru
      _
    // Predicated region
    $region26: #{tpu_custom_call.1} parent=1 // pred_check
      _
    $region27: #{tpu_custom_call.1} parent=1 // pred_check_branch
      %56 = sbr.rel (0) target = $region29
    $region28: #{tpu_custom_call.1} parent=1 // pred_region
      %57 = dma.done [#allocation8], 640
    $region29: #{tpu_custom_call.1} parent=1 // pred_fallthru
      _
    %v58 = vld [vmem:[#allocation5] sm:$0xff]
    %v59 = vld [vmem:[#allocation5 + $0x8] sm:$0xff]
    %v60 = vld [vmem:[#allocation5 + $0x10] sm:$0xff]
    %v61 = vld [vmem:[#allocation5 + $0x18] sm:$0xff]
    %v62 = vld [vmem:[#allocation7] sm:$0xff]
    %v63 = vld [vmem:[#allocation7 + $0x8] sm:$0xff]
    %v64 = vld [vmem:[#allocation7 + $0x10] sm:$0xff]
    %v65 = vld [vmem:[#allocation7 + $0x18] sm:$0xff]
    %v66 = vsub.f32 %v58, %v62
    %v67 = vsub.f32 %v59, %v63
    %v68 = vsub.f32 %v60, %v64
    %v69 = vsub.f32 %v61, %v65
    %p70 = scmp.eq.s32.totalorder 0, 0
    // Predicated region
    $region30: #{tpu_custom_call.1} parent=1 // pred_check
      %p71 = pneg %p70
    $region31: #{tpu_custom_call.1} parent=1 // pred_check_branch
      %73 = sbr.rel (%p71) target = $region33
    $region32: #{tpu_custom_call.1} parent=1 // pred_region
      %vm74 = vcmask 1024
      %75 = vst.msk [vmem:[#allocation3] sm:$0x3] %vm74, 0.0
      %76 = vst.msk [vmem:[#allocation4] sm:$0x3] %vm74, 0.0
      %vm77 = vcmask 311296
      %78 = vst.msk [vmem:[#allocation2] sm:$0x1] %vm77, %v66
      %79 = vst.msk [vmem:[#allocation2 + $0x1] sm:$0x1] %vm77, %v68
    $region33: #{tpu_custom_call.1} parent=1 // pred_fallthru
      _
    %v80 = vld [vmem:[#allocation2] sm:$0x1]
    %v81 = vld [vmem:[#allocation2 + $0x1] sm:$0x1]
    %vm86 = vcmask 1040384
    %v87 = vrot.slane %v66, 7
    %v88 = vrot.slane %v67, 7
    %v89 = vsel %vm86, %v87, %v88
    %v90 = vrot.slane %v68, 7
    %v91 = vrot.slane %v69, 7
    %v92 = vsel %vm86, %v90, %v91
    %v97 = vsel %vm86, %v80, %v87
    %v98 = vsel %vm86, %v81, %v90
    %v99 = vsub.f32 %v66, %v97
    %v100 = vsub.f32 %v67, %v89
    %v101 = vsub.f32 %v68, %v98
    %v102 = vsub.f32 %v69, %v92
    %vm103 = vcmask 318471
    %104 = vst.msk [vmem:[#allocation2 - $0x7] sm:$0x80] %vm103, %v67
    %105 = vst.msk [vmem:[#allocation2 - $0x6] sm:$0x80] %vm103, %v69
    %v106 = vmul.f32 %v99, %v99
    %v107 = vmul.f32 %v100, %v100
    %v108 = vmul.f32 %v101, %v101
    %v109 = vmul.f32 %v102, %v102
    %v110 = vld [vmem:[#allocation9] sm:$0xff]
    %v111 = vld [vmem:[#allocation9 + $0x8] sm:$0xff]
    %v112 = vld [vmem:[#allocation9 + $0x10] sm:$0xff]
    %v113 = vld [vmem:[#allocation9 + $0x18] sm:$0xff]
    %v114 = vld [vmem:[#allocation9 + $0x20] sm:$0x7f]
    %vm115 = vcmask 318464
    %v117 = vsel %vm115, %v106, 0
    %v120 = vsel %vm115, %v107, 0
    %vm122 = vcmask 1046528
    %v124 = vsel %vm122, %v114, 0
    %126 = vmatprep.subr.mxu0 0.0
    %127 = vmatpush1.msra.mxu0 0.0
    %128 = vmatprep.subr.mxu0 0.0
    %129 = vmatpush1.msra.mxu0 0.0
    %130 = vmatprep.subr.mxu0 0.0
    %131 = vmatpush1.msra.mxu0 0.0
    %132 = vmatprep.subr.mxu0 0.0
    %133 = vmatpush1.msra.mxu0 0.0
    %134 = vmatprep.subr.mxu0 0.0
    %135 = vmatpush1.msra.mxu0 0.0
    %136 = vmatprep.subr.mxu0 0.0
    %137 = vmatpush1.msra.mxu0 0.0
    %138 = vmatprep.subr.mxu0 0.0
    %139 = vmatpush1.msra.mxu0 0.0
    %140 = vmatprep.subr.mxu0 0.0
    %141 = vmatpush1.msra.mxu0 0.0
    %142 = vmatprep.subr.mxu0 0.0
    %143 = vmatpush1.msra.mxu0 0.0
    %144 = vmatprep.subr.mxu0 0.0
    %145 = vmatpush1.msra.mxu0 0.0
    %146 = vmatprep.subr.mxu0 0.0
    %147 = vmatpush1.msra.mxu0 0.0
    %148 = vmatprep.subr.mxu0 0.0
    %v149 = vand.u32 %v124, 4294901760
    %150 = vmatpush1.msra.mxu0 %v149
    %151 = vmatprep.subr.mxu0 0.0
    %v152 = vand.u32 %v113, 4294901760
    %153 = vmatpush1.msra.mxu0 %v152
    %154 = vmatprep.subr.mxu0 0.0
    %v155 = vand.u32 %v112, 4294901760
    %156 = vmatpush1.msra.mxu0 %v155
    %157 = vmatprep.subr.mxu0 0.0
    %v158 = vand.u32 %v111, 4294901760
    %159 = vmatpush1.msra.mxu0 %v158
    %160 = vmatprep.subr.mxu0 0.0
    %v161 = vand.u32 %v110, 4294901760
    %162 = vmatpush1.msra.mxu0 %v161
    %163 = vmatprep.subr.mxu0 0.0
    %164 = vmatpush2.msra.mxu0 0.0
    %165 = vmatprep.subr.mxu0 0.0
    %166 = vmatpush2.msra.mxu0 0.0
    %167 = vmatprep.subr.mxu0 0.0
    %168 = vmatpush2.msra.mxu0 0.0
    %169 = vmatprep.subr.mxu0 0.0
    %170 = vmatpush2.msra.mxu0 0.0
    %171 = vmatprep.subr.mxu0 0.0
    %172 = vmatpush2.msra.mxu0 0.0
    %173 = vmatprep.subr.mxu0 0.0
    %174 = vmatpush2.msra.mxu0 0.0
    %175 = vmatprep.subr.mxu0 0.0
    %176 = vmatpush2.msra.mxu0 0.0
    %177 = vmatprep.subr.mxu0 0.0
    %178 = vmatpush2.msra.mxu0 0.0
    %179 = vmatprep.subr.mxu0 0.0
    %180 = vmatpush2.msra.mxu0 0.0
    %181 = vmatprep.subr.mxu0 0.0
    %182 = vmatpush2.msra.mxu0 0.0
    %183 = vmatprep.subr.mxu0 0.0
    %184 = vmatpush2.msra.mxu0 0.0
    %185 = vmatprep.subr.mxu0 0.0
    %186 = vmatpush2.msra.mxu0 0.0
    %187 = vmatprep.subr.mxu0 0.0
    %188 = vmatpush2.msra.mxu0 0.0
    %189 = vmatprep.subr.mxu0 0.0
    %190 = vmatpush2.msra.mxu0 0.0
    %191 = vmatprep.subr.mxu0 0.0
    %192 = vmatpush2.msra.mxu0 0.0
    %193 = vmatprep.subr.mxu0 0.0
    %194 = vmatpush2.msra.mxu0 0.0
    %195 = vmatprep.mubr.f32.mxu0 0.0
    %v196 = vand.u32 %v117, 4294901760
    %v197 = vsub.f32 %v117, %v196
    %v198 = vand.u32 %v197, 4294901760
    %v199 = vsub.f32 %v197, %v198
    %v200 = vand.u32 %v199, 4294901760
    %201 = vmatmul.mubr.f32.gmra.mxu0 %v200
    %v202 = vpop.f32.mrf.mxu0
    %v203 = vadd.f32 0.0, %v202
    %v204 = vpop.f32.mrf.mxu0
    %205 = vmatprep.mubr.f32.mxu0 0.0
    %v206 = vand.u32 %v120, 4294901760
    %v207 = vsub.f32 %v120, %v206
    %v208 = vand.u32 %v207, 4294901760
    %v209 = vsub.f32 %v207, %v208
    %v210 = vand.u32 %v209, 4294901760
    %211 = vmatmul.mubr.f32.gmra.mxu0 %v210
    %v212 = vpop.f32.mrf.mxu0
    %v213 = vadd.f32 0.0, %v212
    %v214 = vpop.f32.mrf.mxu0
    %215 = vdwg.mxu0
    %216 = vmatprep.subr.mxu0 0.0
    %217 = vmatpush1.msra.mxu0 0.0
    %218 = vmatprep.subr.mxu0 0.0
    %219 = vmatpush1.msra.mxu0 0.0
    %220 = vmatprep.subr.mxu0 0.0
    %221 = vmatpush1.msra.mxu0 0.0
    %222 = vmatprep.subr.mxu0 0.0
    %223 = vmatpush1.msra.mxu0 0.0
    %224 = vmatprep.subr.mxu0 0.0
    %225 = vmatpush1.msra.mxu0 0.0
    %226 = vmatprep.subr.mxu0 0.0
    %227 = vmatpush1.msra.mxu0 0.0
    %228 = vmatprep.subr.mxu0 0.0
    %229 = vmatpush1.msra.mxu0 0.0
    %230 = vmatprep.subr.mxu0 0.0
    %231 = vmatpush1.msra.mxu0 0.0
    %232 = vmatprep.subr.mxu0 0.0
    %233 = vmatpush1.msra.mxu0 0.0
    %234 = vmatprep.subr.mxu0 0.0
    %235 = vmatpush1.msra.mxu0 0.0
    %236 = vmatprep.subr.mxu0 0.0
    %237 = vmatpush1.msra.mxu0 0.0
    %238 = vmatprep.subr.mxu0 0.0
    %v239 = vand.u32 %v124, 4294901760
    %v240 = vsub.f32 %v124, %v239
    %v241 = vand.u32 %v240, 4294901760
    %v242 = vsub.f32 %v240, %v241
    %v243 = vand.u32 %v242, 4294901760
    %244 = vmatpush1.msra.mxu0 %v243
    %245 = vmatprep.subr.mxu0 0.0
    %v246 = vand.u32 %v113, 4294901760
    %v247 = vsub.f32 %v113, %v246
    %v248 = vand.u32 %v247, 4294901760
    %v249 = vsub.f32 %v247, %v248
    %v250 = vand.u32 %v249, 4294901760
    %251 = vmatpush1.msra.mxu0 %v250
    %252 = vmatprep.subr.mxu0 0.0
    %v253 = vand.u32 %v112, 4294901760
    %v254 = vsub.f32 %v112, %v253
    %v255 = vand.u32 %v254, 4294901760
    %v256 = vsub.f32 %v254, %v255
    %v257 = vand.u32 %v256, 4294901760
    %258 = vmatpush1.msra.mxu0 %v257
    %259 = vmatprep.subr.mxu0 0.0
    %v260 = vand.u32 %v111, 4294901760
    %v261 = vsub.f32 %v111, %v260
    %v262 = vand.u32 %v261, 4294901760
    %v263 = vsub.f32 %v261, %v262
    %v264 = vand.u32 %v263, 4294901760
    %265 = vmatpush1.msra.mxu0 %v264
    %266 = vmatprep.subr.mxu0 0.0
    %v267 = vand.u32 %v110, 4294901760
    %v268 = vsub.f32 %v110, %v267
    %v269 = vand.u32 %v268, 4294901760
    %v270 = vsub.f32 %v268, %v269
    %v271 = vand.u32 %v270, 4294901760
    %272 = vmatpush1.msra.mxu0 %v271
    %273 = vmatprep.subr.mxu0 0.0
    %274 = vmatpush2.msra.mxu0 0.0
    %275 = vmatprep.subr.mxu0 0.0
    %276 = vmatpush2.msra.mxu0 0.0
    %277 = vmatprep.subr.mxu0 0.0
    %278 = vmatpush2.msra.mxu0 0.0
    %279 = vmatprep.subr.mxu0 0.0
    %280 = vmatpush2.msra.mxu0 0.0
    %281 = vmatprep.subr.mxu0 0.0
    %282 = vmatpush2.msra.mxu0 0.0
    %283 = vmatprep.subr.mxu0 0.0
    %284 = vmatpush2.msra.mxu0 0.0
    %285 = vmatprep.subr.mxu0 0.0
    %286 = vmatpush2.msra.mxu0 0.0
    %287 = vmatprep.subr.mxu0 0.0
    %288 = vmatpush2.msra.mxu0 0.0
    %289 = vmatprep.subr.mxu0 0.0
    %290 = vmatpush2.msra.mxu0 0.0
    %291 = vmatprep.subr.mxu0 0.0
    %292 = vmatpush2.msra.mxu0 0.0
    %293 = vmatprep.subr.mxu0 0.0
    %294 = vmatpush2.msra.mxu0 0.0
    %295 = vmatprep.subr.mxu0 0.0
    %296 = vmatpush2.msra.mxu0 0.0
    %297 = vmatprep.subr.mxu0 0.0
    %298 = vmatpush2.msra.mxu0 0.0
    %299 = vmatprep.subr.mxu0 0.0
    %300 = vmatpush2.msra.mxu0 0.0
    %301 = vmatprep.subr.mxu0 0.0
    %302 = vmatpush2.msra.mxu0 0.0
    %303 = vmatprep.subr.mxu0 0.0
    %304 = vmatpush2.msra.mxu0 0.0
    %305 = vmatprep.mubr.f32.mxu0 0.0
    %v306 = vand.u32 %v117, 4294901760
    %307 = vmatmul.mubr.f32.gmra.mxu0 %v306
    %v308 = vpop.f32.mrf.mxu0
    %v309 = vadd.f32 %v203, %v308
    %v310 = vpop.f32.mrf.mxu0
    %311 = vmatprep.mubr.f32.mxu0 0.0
    %v312 = vand.u32 %v120, 4294901760
    %313 = vmatmul.mubr.f32.gmra.mxu0 %v312
    %v314 = vpop.f32.mrf.mxu0
    %v315 = vadd.f32 %v213, %v314
    %v316 = vpop.f32.mrf.mxu0
    %317 = vdwg.mxu0
    %318 = vmatprep.subr.mxu0 0.0
    %319 = vmatpush1.msra.mxu0 0.0
    %320 = vmatprep.subr.mxu0 0.0
    %321 = vmatpush1.msra.mxu0 0.0
    %322 = vmatprep.subr.mxu0 0.0
    %323 = vmatpush1.msra.mxu0 0.0
    %324 = vmatprep.subr.mxu0 0.0
    %325 = vmatpush1.msra.mxu0 0.0
    %326 = vmatprep.subr.mxu0 0.0
    %327 = vmatpush1.msra.mxu0 0.0
    %328 = vmatprep.subr.mxu0 0.0
    %329 = vmatpush1.msra.mxu0 0.0
    %330 = vmatprep.subr.mxu0 0.0
    %331 = vmatpush1.msra.mxu0 0.0
    %332 = vmatprep.subr.mxu0 0.0
    %333 = vmatpush1.msra.mxu0 0.0
    %334 = vmatprep.subr.mxu0 0.0
    %335 = vmatpush1.msra.mxu0 0.0
    %336 = vmatprep.subr.mxu0 0.0
    %337 = vmatpush1.msra.mxu0 0.0
    %338 = vmatprep.subr.mxu0 0.0
    %339 = vmatpush1.msra.mxu0 0.0
    %340 = vmatprep.subr.mxu0 0.0
    %v341 = vand.u32 %v124, 4294901760
    %v342 = vsub.f32 %v124, %v341
    %343 = vmatpush1.msra.mxu0 %v342
    %344 = vmatprep.subr.mxu0 0.0
    %v345 = vand.u32 %v113, 4294901760
    %v346 = vsub.f32 %v113, %v345
    %347 = vmatpush1.msra.mxu0 %v346
    %348 = vmatprep.subr.mxu0 0.0
    %v349 = vand.u32 %v112, 4294901760
    %v350 = vsub.f32 %v112, %v349
    %351 = vmatpush1.msra.mxu0 %v350
    %352 = vmatprep.subr.mxu0 0.0
    %v353 = vand.u32 %v111, 4294901760
    %v354 = vsub.f32 %v111, %v353
    %355 = vmatpush1.msra.mxu0 %v354
    %356 = vmatprep.subr.mxu0 0.0
    %v357 = vand.u32 %v110, 4294901760
    %v358 = vsub.f32 %v110, %v357
    %359 = vmatpush1.msra.mxu0 %v358
    %360 = vmatprep.subr.mxu0 0.0
    %361 = vmatpush2.msra.mxu0 0.0
    %362 = vmatprep.subr.mxu0 0.0
    %363 = vmatpush2.msra.mxu0 0.0
    %364 = vmatprep.subr.mxu0 0.0
    %365 = vmatpush2.msra.mxu0 0.0
    %366 = vmatprep.subr.mxu0 0.0
    %367 = vmatpush2.msra.mxu0 0.0
    %368 = vmatprep.subr.mxu0 0.0
    %369 = vmatpush2.msra.mxu0 0.0
    %370 = vmatprep.subr.mxu0 0.0
    %371 = vmatpush2.msra.mxu0 0.0
    %372 = vmatprep.subr.mxu0 0.0
    %373 = vmatpush2.msra.mxu0 0.0
    %374 = vmatprep.subr.mxu0 0.0
    %375 = vmatpush2.msra.mxu0 0.0
    %376 = vmatprep.subr.mxu0 0.0
    %377 = vmatpush2.msra.mxu0 0.0
    %378 = vmatprep.subr.mxu0 0.0
    %379 = vmatpush2.msra.mxu0 0.0
    %380 = vmatprep.subr.mxu0 0.0
    %381 = vmatpush2.msra.mxu0 0.0
    %382 = vmatprep.subr.mxu0 0.0
    %383 = vmatpush2.msra.mxu0 0.0
    %384 = vmatprep.subr.mxu0 0.0
    %385 = vmatpush2.msra.mxu0 0.0
    %386 = vmatprep.subr.mxu0 0.0
    %387 = vmatpush2.msra.mxu0 0.0
    %388 = vmatprep.subr.mxu0 0.0
    %389 = vmatpush2.msra.mxu0 0.0
    %390 = vmatprep.subr.mxu0 0.0
    %391 = vmatpush2.msra.mxu0 0.0
    %392 = vmatprep.mubr.f32.mxu0 0.0
    %v393 = vand.u32 %v117, 4294901760
    %v394 = vsub.f32 %v117, %v393
    %395 = vmatmul.mubr.f32.gmra.mxu0 %v394
    %v396 = vpop.f32.mrf.mxu0
    %v397 = vadd.f32 %v309, %v396
    %v398 = vpop.f32.mrf.mxu0
    %399 = vmatprep.mubr.f32.mxu0 0.0
    %v400 = vand.u32 %v120, 4294901760
    %v401 = vsub.f32 %v120, %v400
    %402 = vmatmul.mubr.f32.gmra.mxu0 %v401
    %v403 = vpop.f32.mrf.mxu0
    %v404 = vadd.f32 %v315, %v403
    %v405 = vpop.f32.mrf.mxu0
    %406 = vdwg.mxu0
    %407 = vmatprep.subr.mxu0 0.0
    %408 = vmatpush1.msra.mxu0 0.0
    %409 = vmatprep.subr.mxu0 0.0
    %410 = vmatpush1.msra.mxu0 0.0
    %411 = vmatprep.subr.mxu0 0.0
    %412 = vmatpush1.msra.mxu0 0.0
    %413 = vmatprep.subr.mxu0 0.0
    %414 = vmatpush1.msra.mxu0 0.0
    %415 = vmatprep.subr.mxu0 0.0
    %416 = vmatpush1.msra.mxu0 0.0
    %417 = vmatprep.subr.mxu0 0.0
    %418 = vmatpush1.msra.mxu0 0.0
    %419 = vmatprep.subr.mxu0 0.0
    %420 = vmatpush1.msra.mxu0 0.0
    %421 = vmatprep.subr.mxu0 0.0
    %422 = vmatpush1.msra.mxu0 0.0
    %423 = vmatprep.subr.mxu0 0.0
    %424 = vmatpush1.msra.mxu0 0.0
    %425 = vmatprep.subr.mxu0 0.0
    %426 = vmatpush1.msra.mxu0 0.0
    %427 = vmatprep.subr.mxu0 0.0
    %428 = vmatpush1.msra.mxu0 0.0
    %429 = vmatprep.subr.mxu0 0.0
    %v430 = vand.u32 %v124, 4294901760
    %431 = vmatpush1.msra.mxu0 %v430
    %432 = vmatprep.subr.mxu0 0.0
    %v433 = vand.u32 %v113, 4294901760
    %434 = vmatpush1.msra.mxu0 %v433
    %435 = vmatprep.subr.mxu0 0.0
    %v436 = vand.u32 %v112, 4294901760
    %437 = vmatpush1.msra.mxu0 %v436
    %438 = vmatprep.subr.mxu0 0.0
    %v439 = vand.u32 %v111, 4294901760
    %440 = vmatpush1.msra.mxu0 %v439
    %441 = vmatprep.subr.mxu0 0.0
    %v442 = vand.u32 %v110, 4294901760
    %443 = vmatpush1.msra.mxu0 %v442
    %444 = vmatprep.subr.mxu0 0.0
    %445 = vmatpush2.msra.mxu0 0.0
    %446 = vmatprep.subr.mxu0 0.0
    %447 = vmatpush2.msra.mxu0 0.0
    %448 = vmatprep.subr.mxu0 0.0
    %449 = vmatpush2.msra.mxu0 0.0
    %450 = vmatprep.subr.mxu0 0.0
    %451 = vmatpush2.msra.mxu0 0.0
    %452 = vmatprep.subr.mxu0 0.0
    %453 = vmatpush2.msra.mxu0 0.0
    %454 = vmatprep.subr.mxu0 0.0
    %455 = vmatpush2.msra.mxu0 0.0
    %456 = vmatprep.subr.mxu0 0.0
    %457 = vmatpush2.msra.mxu0 0.0
    %458 = vmatprep.subr.mxu0 0.0
    %459 = vmatpush2.msra.mxu0 0.0
    %460 = vmatprep.subr.mxu0 0.0
    %461 = vmatpush2.msra.mxu0 0.0
    %462 = vmatprep.subr.mxu0 0.0
    %463 = vmatpush2.msra.mxu0 0.0
    %464 = vmatprep.subr.mxu0 0.0
    %465 = vmatpush2.msra.mxu0 0.0
    %466 = vmatprep.subr.mxu0 0.0
    %467 = vmatpush2.msra.mxu0 0.0
    %468 = vmatprep.subr.mxu0 0.0
    %469 = vmatpush2.msra.mxu0 0.0
    %470 = vmatprep.subr.mxu0 0.0
    %471 = vmatpush2.msra.mxu0 0.0
    %472 = vmatprep.subr.mxu0 0.0
    %473 = vmatpush2.msra.mxu0 0.0
    %474 = vmatprep.subr.mxu0 0.0
    %475 = vmatpush2.msra.mxu0 0.0
    %476 = vmatprep.mubr.f32.mxu0 0.0
    %v477 = vand.u32 %v117, 4294901760
    %v478 = vsub.f32 %v117, %v477
    %v479 = vand.u32 %v478, 4294901760
    %480 = vmatmul.mubr.f32.gmra.mxu0 %v479
    %v481 = vpop.f32.mrf.mxu0
    %v482 = vadd.f32 %v397, %v481
    %v483 = vpop.f32.mrf.mxu0
    %484 = vmatprep.mubr.f32.mxu0 0.0
    %v485 = vand.u32 %v120, 4294901760
    %v486 = vsub.f32 %v120, %v485
    %v487 = vand.u32 %v486, 4294901760
    %488 = vmatmul.mubr.f32.gmra.mxu0 %v487
    %v489 = vpop.f32.mrf.mxu0
    %v490 = vadd.f32 %v404, %v489
    %v491 = vpop.f32.mrf.mxu0
    %492 = vdwg.mxu0
    %493 = vmatprep.subr.mxu0 0.0
    %494 = vmatpush1.msra.mxu0 0.0
    %495 = vmatprep.subr.mxu0 0.0
    %496 = vmatpush1.msra.mxu0 0.0
    %497 = vmatprep.subr.mxu0 0.0
    %498 = vmatpush1.msra.mxu0 0.0
    %499 = vmatprep.subr.mxu0 0.0
    %500 = vmatpush1.msra.mxu0 0.0
    %501 = vmatprep.subr.mxu0 0.0
    %502 = vmatpush1.msra.mxu0 0.0
    %503 = vmatprep.subr.mxu0 0.0
    %504 = vmatpush1.msra.mxu0 0.0
    %505 = vmatprep.subr.mxu0 0.0
    %506 = vmatpush1.msra.mxu0 0.0
    %507 = vmatprep.subr.mxu0 0.0
    %508 = vmatpush1.msra.mxu0 0.0
    %509 = vmatprep.subr.mxu0 0.0
    %510 = vmatpush1.msra.mxu0 0.0
    %511 = vmatprep.subr.mxu0 0.0
    %512 = vmatpush1.msra.mxu0 0.0
    %513 = vmatprep.subr.mxu0 0.0
    %514 = vmatpush1.msra.mxu0 0.0
    %515 = vmatprep.subr.mxu0 0.0
    %v516 = vand.u32 %v124, 4294901760
    %v517 = vsub.f32 %v124, %v516
    %v518 = vand.u32 %v517, 4294901760
    %519 = vmatpush1.msra.mxu0 %v518
    %520 = vmatprep.subr.mxu0 0.0
    %v521 = vand.u32 %v113, 4294901760
    %v522 = vsub.f32 %v113, %v521
    %v523 = vand.u32 %v522, 4294901760
    %524 = vmatpush1.msra.mxu0 %v523
    %525 = vmatprep.subr.mxu0 0.0
    %v526 = vand.u32 %v112, 4294901760
    %v527 = vsub.f32 %v112, %v526
    %v528 = vand.u32 %v527, 4294901760
    %529 = vmatpush1.msra.mxu0 %v528
    %530 = vmatprep.subr.mxu0 0.0
    %v531 = vand.u32 %v111, 4294901760
    %v532 = vsub.f32 %v111, %v531
    %v533 = vand.u32 %v532, 4294901760
    %534 = vmatpush1.msra.mxu0 %v533
    %535 = vmatprep.subr.mxu0 0.0
    %v536 = vand.u32 %v110, 4294901760
    %v537 = vsub.f32 %v110, %v536
    %v538 = vand.u32 %v537, 4294901760
    %539 = vmatpush1.msra.mxu0 %v538
    %540 = vmatprep.subr.mxu0 0.0
    %541 = vmatpush2.msra.mxu0 0.0
    %542 = vmatprep.subr.mxu0 0.0
    %543 = vmatpush2.msra.mxu0 0.0
    %544 = vmatprep.subr.mxu0 0.0
    %545 = vmatpush2.msra.mxu0 0.0
    %546 = vmatprep.subr.mxu0 0.0
    %547 = vmatpush2.msra.mxu0 0.0
    %548 = vmatprep.subr.mxu0 0.0
    %549 = vmatpush2.msra.mxu0 0.0
    %550 = vmatprep.subr.mxu0 0.0
    %551 = vmatpush2.msra.mxu0 0.0
    %552 = vmatprep.subr.mxu0 0.0
    %553 = vmatpush2.msra.mxu0 0.0
    %554 = vmatprep.subr.mxu0 0.0
    %555 = vmatpush2.msra.mxu0 0.0
    %556 = vmatprep.subr.mxu0 0.0
    %557 = vmatpush2.msra.mxu0 0.0
    %558 = vmatprep.subr.mxu0 0.0
    %559 = vmatpush2.msra.mxu0 0.0
    %560 = vmatprep.subr.mxu0 0.0
    %561 = vmatpush2.msra.mxu0 0.0
    %562 = vmatprep.subr.mxu0 0.0
    %563 = vmatpush2.msra.mxu0 0.0
    %564 = vmatprep.subr.mxu0 0.0
    %565 = vmatpush2.msra.mxu0 0.0
    %566 = vmatprep.subr.mxu0 0.0
    %567 = vmatpush2.msra.mxu0 0.0
    %568 = vmatprep.subr.mxu0 0.0
    %569 = vmatpush2.msra.mxu0 0.0
    %570 = vmatprep.subr.mxu0 0.0
    %571 = vmatpush2.msra.mxu0 0.0
    %572 = vmatprep.mubr.f32.mxu0 0.0
    %v573 = vand.u32 %v117, 4294901760
    %574 = vmatmul.mubr.f32.gmra.mxu0 %v573
    %v575 = vpop.f32.mrf.mxu0
    %v576 = vadd.f32 %v482, %v575
    %v577 = vpop.f32.mrf.mxu0
    %578 = vmatprep.mubr.f32.mxu0 0.0
    %v579 = vand.u32 %v120, 4294901760
    %580 = vmatmul.mubr.f32.gmra.mxu0 %v579
    %v581 = vpop.f32.mrf.mxu0
    %v582 = vadd.f32 %v490, %v581
    %v583 = vpop.f32.mrf.mxu0
    %584 = vdwg.mxu0
    %585 = vmatprep.subr.mxu0 0.0
    %586 = vmatpush1.msra.mxu0 0.0
    %587 = vmatprep.subr.mxu0 0.0
    %588 = vmatpush1.msra.mxu0 0.0
    %589 = vmatprep.subr.mxu0 0.0
    %590 = vmatpush1.msra.mxu0 0.0
    %591 = vmatprep.subr.mxu0 0.0
    %592 = vmatpush1.msra.mxu0 0.0
    %593 = vmatprep.subr.mxu0 0.0
    %594 = vmatpush1.msra.mxu0 0.0
    %595 = vmatprep.subr.mxu0 0.0
    %596 = vmatpush1.msra.mxu0 0.0
    %597 = vmatprep.subr.mxu0 0.0
    %598 = vmatpush1.msra.mxu0 0.0
    %599 = vmatprep.subr.mxu0 0.0
    %600 = vmatpush1.msra.mxu0 0.0
    %601 = vmatprep.subr.mxu0 0.0
    %602 = vmatpush1.msra.mxu0 0.0
    %603 = vmatprep.subr.mxu0 0.0
    %604 = vmatpush1.msra.mxu0 0.0
    %605 = vmatprep.subr.mxu0 0.0
    %606 = vmatpush1.msra.mxu0 0.0
    %607 = vmatprep.subr.mxu0 0.0
    %v608 = vand.u32 %v124, 4294901760
    %609 = vmatpush1.msra.mxu0 %v608
    %610 = vmatprep.subr.mxu0 0.0
    %v611 = vand.u32 %v113, 4294901760
    %612 = vmatpush1.msra.mxu0 %v611
    %613 = vmatprep.subr.mxu0 0.0
    %v614 = vand.u32 %v112, 4294901760
    %615 = vmatpush1.msra.mxu0 %v614
    %616 = vmatprep.subr.mxu0 0.0
    %v617 = vand.u32 %v111, 4294901760
    %618 = vmatpush1.msra.mxu0 %v617
    %619 = vmatprep.subr.mxu0 0.0
    %v620 = vand.u32 %v110, 4294901760
    %621 = vmatpush1.msra.mxu0 %v620
    %622 = vmatprep.subr.mxu0 0.0
    %623 = vmatpush2.msra.mxu0 0.0
    %624 = vmatprep.subr.mxu0 0.0
    %625 = vmatpush2.msra.mxu0 0.0
    %626 = vmatprep.subr.mxu0 0.0
    %627 = vmatpush2.msra.mxu0 0.0
    %628 = vmatprep.subr.mxu0 0.0
    %629 = vmatpush2.msra.mxu0 0.0
    %630 = vmatprep.subr.mxu0 0.0
    %631 = vmatpush2.msra.mxu0 0.0
    %632 = vmatprep.subr.mxu0 0.0
    %633 = vmatpush2.msra.mxu0 0.0
    %634 = vmatprep.subr.mxu0 0.0
    %635 = vmatpush2.msra.mxu0 0.0
    %636 = vmatprep.subr.mxu0 0.0
    %637 = vmatpush2.msra.mxu0 0.0
    %638 = vmatprep.subr.mxu0 0.0
    %639 = vmatpush2.msra.mxu0 0.0
    %640 = vmatprep.subr.mxu0 0.0
    %641 = vmatpush2.msra.mxu0 0.0
    %642 = vmatprep.subr.mxu0 0.0
    %643 = vmatpush2.msra.mxu0 0.0
    %644 = vmatprep.subr.mxu0 0.0
    %645 = vmatpush2.msra.mxu0 0.0
    %646 = vmatprep.subr.mxu0 0.0
    %647 = vmatpush2.msra.mxu0 0.0
    %648 = vmatprep.subr.mxu0 0.0
    %649 = vmatpush2.msra.mxu0 0.0
    %650 = vmatprep.subr.mxu0 0.0
    %651 = vmatpush2.msra.mxu0 0.0
    %652 = vmatprep.subr.mxu0 0.0
    %653 = vmatpush2.msra.mxu0 0.0
    %654 = vmatprep.mubr.f32.mxu0 0.0
    %v655 = vand.u32 %v117, 4294901760
    %656 = vmatmul.mubr.f32.gmra.mxu0 %v655
    %v657 = vpop.f32.mrf.mxu0
    %v658 = vadd.f32 %v576, %v657
    %v659 = vpop.f32.mrf.mxu0
    %660 = vmatprep.mubr.f32.mxu0 0.0
    %v661 = vand.u32 %v120, 4294901760
    %662 = vmatmul.mubr.f32.gmra.mxu0 %v661
    %v663 = vpop.f32.mrf.mxu0
    %v664 = vadd.f32 %v582, %v663
    %v665 = vpop.f32.mrf.mxu0
    %666 = vdwg.mxu0
    %v668 = vsel %vm115, %v108, 0
    %v671 = vsel %vm115, %v109, 0
    %673 = vmatprep.subr.mxu0 0.0
    %674 = vmatpush1.msra.mxu0 0.0
    %675 = vmatprep.subr.mxu0 0.0
    %676 = vmatpush1.msra.mxu0 0.0
    %677 = vmatprep.subr.mxu0 0.0
    %678 = vmatpush1.msra.mxu0 0.0
    %679 = vmatprep.subr.mxu0 0.0
    %680 = vmatpush1.msra.mxu0 0.0
    %681 = vmatprep.subr.mxu0 0.0
    %682 = vmatpush1.msra.mxu0 0.0
    %683 = vmatprep.subr.mxu0 0.0
    %684 = vmatpush1.msra.mxu0 0.0
    %685 = vmatprep.subr.mxu0 0.0
    %686 = vmatpush1.msra.mxu0 0.0
    %687 = vmatprep.subr.mxu0 0.0
    %688 = vmatpush1.msra.mxu0 0.0
    %689 = vmatprep.subr.mxu0 0.0
    %690 = vmatpush1.msra.mxu0 0.0
    %691 = vmatprep.subr.mxu0 0.0
    %692 = vmatpush1.msra.mxu0 0.0
    %693 = vmatprep.subr.mxu0 0.0
    %694 = vmatpush1.msra.mxu0 0.0
    %695 = vmatprep.subr.mxu0 0.0
    %v696 = vand.u32 %v124, 4294901760
    %697 = vmatpush1.msra.mxu0 %v696
    %698 = vmatprep.subr.mxu0 0.0
    %v699 = vand.u32 %v113, 4294901760
    %700 = vmatpush1.msra.mxu0 %v699
    %701 = vmatprep.subr.mxu0 0.0
    %v702 = vand.u32 %v112, 4294901760
    %703 = vmatpush1.msra.mxu0 %v702
    %704 = vmatprep.subr.mxu0 0.0
    %v705 = vand.u32 %v111, 4294901760
    %706 = vmatpush1.msra.mxu0 %v705
    %707 = vmatprep.subr.mxu0 0.0
    %v708 = vand.u32 %v110, 4294901760
    %709 = vmatpush1.msra.mxu0 %v708
    %710 = vmatprep.subr.mxu0 0.0
    %711 = vmatpush2.msra.mxu0 0.0
    %712 = vmatprep.subr.mxu0 0.0
    %713 = vmatpush2.msra.mxu0 0.0
    %714 = vmatprep.subr.mxu0 0.0
    %715 = vmatpush2.msra.mxu0 0.0
    %716 = vmatprep.subr.mxu0 0.0
    %717 = vmatpush2.msra.mxu0 0.0
    %718 = vmatprep.subr.mxu0 0.0
    %719 = vmatpush2.msra.mxu0 0.0
    %720 = vmatprep.subr.mxu0 0.0
    %721 = vmatpush2.msra.mxu0 0.0
    %722 = vmatprep.subr.mxu0 0.0
    %723 = vmatpush2.msra.mxu0 0.0
    %724 = vmatprep.subr.mxu0 0.0
    %725 = vmatpush2.msra.mxu0 0.0
    %726 = vmatprep.subr.mxu0 0.0
    %727 = vmatpush2.msra.mxu0 0.0
    %728 = vmatprep.subr.mxu0 0.0
    %729 = vmatpush2.msra.mxu0 0.0
    %730 = vmatprep.subr.mxu0 0.0
    %731 = vmatpush2.msra.mxu0 0.0
    %732 = vmatprep.subr.mxu0 0.0
    %733 = vmatpush2.msra.mxu0 0.0
    %734 = vmatprep.subr.mxu0 0.0
    %735 = vmatpush2.msra.mxu0 0.0
    %736 = vmatprep.subr.mxu0 0.0
    %737 = vmatpush2.msra.mxu0 0.0
    %738 = vmatprep.subr.mxu0 0.0
    %739 = vmatpush2.msra.mxu0 0.0
    %740 = vmatprep.subr.mxu0 0.0
    %741 = vmatpush2.msra.mxu0 0.0
    %742 = vmatprep.mubr.f32.mxu0 0.0
    %v743 = vand.u32 %v668, 4294901760
    %v744 = vsub.f32 %v668, %v743
    %v745 = vand.u32 %v744, 4294901760
    %v746 = vsub.f32 %v744, %v745
    %v747 = vand.u32 %v746, 4294901760
    %748 = vmatmul.mubr.f32.gmra.mxu0 %v747
    %v749 = vpop.f32.mrf.mxu0
    %v750 = vadd.f32 0.0, %v749
    %v751 = vpop.f32.mrf.mxu0
    %752 = vmatprep.mubr.f32.mxu0 0.0
    %v753 = vand.u32 %v671, 4294901760
    %v754 = vsub.f32 %v671, %v753
    %v755 = vand.u32 %v754, 4294901760
    %v756 = vsub.f32 %v754, %v755
    %v757 = vand.u32 %v756, 4294901760
    %758 = vmatmul.mubr.f32.gmra.mxu0 %v757
    %v759 = vpop.f32.mrf.mxu0
    %v760 = vadd.f32 0.0, %v759
    %v761 = vpop.f32.mrf.mxu0
    %762 = vdwg.mxu0
    %763 = vmatprep.subr.mxu0 0.0
    %764 = vmatpush1.msra.mxu0 0.0
    %765 = vmatprep.subr.mxu0 0.0
    %766 = vmatpush1.msra.mxu0 0.0
    %767 = vmatprep.subr.mxu0 0.0
    %768 = vmatpush1.msra.mxu0 0.0
    %769 = vmatprep.subr.mxu0 0.0
    %770 = vmatpush1.msra.mxu0 0.0
    %771 = vmatprep.subr.mxu0 0.0
    %772 = vmatpush1.msra.mxu0 0.0
    %773 = vmatprep.subr.mxu0 0.0
    %774 = vmatpush1.msra.mxu0 0.0
    %775 = vmatprep.subr.mxu0 0.0
    %776 = vmatpush1.msra.mxu0 0.0
    %777 = vmatprep.subr.mxu0 0.0
    %778 = vmatpush1.msra.mxu0 0.0
    %779 = vmatprep.subr.mxu0 0.0
    %780 = vmatpush1.msra.mxu0 0.0
    %781 = vmatprep.subr.mxu0 0.0
    %782 = vmatpush1.msra.mxu0 0.0
    %783 = vmatprep.subr.mxu0 0.0
    %784 = vmatpush1.msra.mxu0 0.0
    %785 = vmatprep.subr.mxu0 0.0
    %v786 = vand.u32 %v124, 4294901760
    %v787 = vsub.f32 %v124, %v786
    %v788 = vand.u32 %v787, 4294901760
    %v789 = vsub.f32 %v787, %v788
    %v790 = vand.u32 %v789, 4294901760
    %791 = vmatpush1.msra.mxu0 %v790
    %792 = vmatprep.subr.mxu0 0.0
    %v793 = vand.u32 %v113, 4294901760
    %v794 = vsub.f32 %v113, %v793
    %v795 = vand.u32 %v794, 4294901760
    %v796 = vsub.f32 %v794, %v795
    %v797 = vand.u32 %v796, 4294901760
    %798 = vmatpush1.msra.mxu0 %v797
    %799 = vmatprep.subr.mxu0 0.0
    %v800 = vand.u32 %v112, 4294901760
    %v801 = vsub.f32 %v112, %v800
    %v802 = vand.u32 %v801, 4294901760
    %v803 = vsub.f32 %v801, %v802
    %v804 = vand.u32 %v803, 4294901760
    %805 = vmatpush1.msra.mxu0 %v804
    %806 = vmatprep.subr.mxu0 0.0
    %v807 = vand.u32 %v111, 4294901760
    %v808 = vsub.f32 %v111, %v807
    %v809 = vand.u32 %v808, 4294901760
    %v810 = vsub.f32 %v808, %v809
    %v811 = vand.u32 %v810, 4294901760
    %812 = vmatpush1.msra.mxu0 %v811
    %813 = vmatprep.subr.mxu0 0.0
    %v814 = vand.u32 %v110, 4294901760
    %v815 = vsub.f32 %v110, %v814
    %v816 = vand.u32 %v815, 4294901760
    %v817 = vsub.f32 %v815, %v816
    %v818 = vand.u32 %v817, 4294901760
    %819 = vmatpush1.msra.mxu0 %v818
    %820 = vmatprep.subr.mxu0 0.0
    %821 = vmatpush2.msra.mxu0 0.0
    %822 = vmatprep.subr.mxu0 0.0
    %823 = vmatpush2.msra.mxu0 0.0
    %824 = vmatprep.subr.mxu0 0.0
    %825 = vmatpush2.msra.mxu0 0.0
    %826 = vmatprep.subr.mxu0 0.0
    %827 = vmatpush2.msra.mxu0 0.0
    %828 = vmatprep.subr.mxu0 0.0
    %829 = vmatpush2.msra.mxu0 0.0
    %830 = vmatprep.subr.mxu0 0.0
    %831 = vmatpush2.msra.mxu0 0.0
    %832 = vmatprep.subr.mxu0 0.0
    %833 = vmatpush2.msra.mxu0 0.0
    %834 = vmatprep.subr.mxu0 0.0
    %835 = vmatpush2.msra.mxu0 0.0
    %836 = vmatprep.subr.mxu0 0.0
    %837 = vmatpush2.msra.mxu0 0.0
    %838 = vmatprep.subr.mxu0 0.0
    %839 = vmatpush2.msra.mxu0 0.0
    %840 = vmatprep.subr.mxu0 0.0
    %841 = vmatpush2.msra.mxu0 0.0
    %842 = vmatprep.subr.mxu0 0.0
    %843 = vmatpush2.msra.mxu0 0.0
    %844 = vmatprep.subr.mxu0 0.0
    %845 = vmatpush2.msra.mxu0 0.0
    %846 = vmatprep.subr.mxu0 0.0
    %847 = vmatpush2.msra.mxu0 0.0
    %848 = vmatprep.subr.mxu0 0.0
    %849 = vmatpush2.msra.mxu0 0.0
    %850 = vmatprep.subr.mxu0 0.0
    %851 = vmatpush2.msra.mxu0 0.0
    %852 = vmatprep.mubr.f32.mxu0 0.0
    %v853 = vand.u32 %v668, 4294901760
    %854 = vmatmul.mubr.f32.gmra.mxu0 %v853
    %v855 = vpop.f32.mrf.mxu0
    %v856 = vadd.f32 %v750, %v855
    %v857 = vpop.f32.mrf.mxu0
    %858 = vmatprep.mubr.f32.mxu0 0.0
    %v859 = vand.u32 %v671, 4294901760
    %860 = vmatmul.mubr.f32.gmra.mxu0 %v859
    %v861 = vpop.f32.mrf.mxu0
    %v862 = vadd.f32 %v760, %v861
    %v863 = vpop.f32.mrf.mxu0
    %864 = vdwg.mxu0
    %865 = vmatprep.subr.mxu0 0.0
    %866 = vmatpush1.msra.mxu0 0.0
    %867 = vmatprep.subr.mxu0 0.0
    %868 = vmatpush1.msra.mxu0 0.0
    %869 = vmatprep.subr.mxu0 0.0
    %870 = vmatpush1.msra.mxu0 0.0
    %871 = vmatprep.subr.mxu0 0.0
    %872 = vmatpush1.msra.mxu0 0.0
    %873 = vmatprep.subr.mxu0 0.0
    %874 = vmatpush1.msra.mxu0 0.0
    %875 = vmatprep.subr.mxu0 0.0
    %876 = vmatpush1.msra.mxu0 0.0
    %877 = vmatprep.subr.mxu0 0.0
    %878 = vmatpush1.msra.mxu0 0.0
    %879 = vmatprep.subr.mxu0 0.0
    %880 = vmatpush1.msra.mxu0 0.0
    %881 = vmatprep.subr.mxu0 0.0
    %882 = vmatpush1.msra.mxu0 0.0
    %883 = vmatprep.subr.mxu0 0.0
    %884 = vmatpush1.msra.mxu0 0.0
    %885 = vmatprep.subr.mxu0 0.0
    %886 = vmatpush1.msra.mxu0 0.0
    %887 = vmatprep.subr.mxu0 0.0
    %v888 = vand.u32 %v124, 4294901760
    %v889 = vsub.f32 %v124, %v888
    %890 = vmatpush1.msra.mxu0 %v889
    %891 = vmatprep.subr.mxu0 0.0
    %v892 = vand.u32 %v113, 4294901760
    %v893 = vsub.f32 %v113, %v892
    %894 = vmatpush1.msra.mxu0 %v893
    %895 = vmatprep.subr.mxu0 0.0
    %v896 = vand.u32 %v112, 4294901760
    %v897 = vsub.f32 %v112, %v896
    %898 = vmatpush1.msra.mxu0 %v897
    %899 = vmatprep.subr.mxu0 0.0
    %v900 = vand.u32 %v111, 4294901760
    %v901 = vsub.f32 %v111, %v900
    %902 = vmatpush1.msra.mxu0 %v901
    %903 = vmatprep.subr.mxu0 0.0
    %v904 = vand.u32 %v110, 4294901760
    %v905 = vsub.f32 %v110, %v904
    %906 = vmatpush1.msra.mxu0 %v905
    %907 = vmatprep.subr.mxu0 0.0
    %908 = vmatpush2.msra.mxu0 0.0
    %909 = vmatprep.subr.mxu0 0.0
    %910 = vmatpush2.msra.mxu0 0.0
    %911 = vmatprep.subr.mxu0 0.0
    %912 = vmatpush2.msra.mxu0 0.0
    %913 = vmatprep.subr.mxu0 0.0
    %914 = vmatpush2.msra.mxu0 0.0
    %915 = vmatprep.subr.mxu0 0.0
    %916 = vmatpush2.msra.mxu0 0.0
    %917 = vmatprep.subr.mxu0 0.0
    %918 = vmatpush2.msra.mxu0 0.0
    %919 = vmatprep.subr.mxu0 0.0
    %920 = vmatpush2.msra.mxu0 0.0
    %921 = vmatprep.subr.mxu0 0.0
    %922 = vmatpush2.msra.mxu0 0.0
    %923 = vmatprep.subr.mxu0 0.0
    %924 = vmatpush2.msra.mxu0 0.0
    %925 = vmatprep.subr.mxu0 0.0
    %926 = vmatpush2.msra.mxu0 0.0
    %927 = vmatprep.subr.mxu0 0.0
    %928 = vmatpush2.msra.mxu0 0.0
    %929 = vmatprep.subr.mxu0 0.0
    %930 = vmatpush2.msra.mxu0 0.0
    %931 = vmatprep.subr.mxu0 0.0
    %932 = vmatpush2.msra.mxu0 0.0
    %933 = vmatprep.subr.mxu0 0.0
    %934 = vmatpush2.msra.mxu0 0.0
    %935 = vmatprep.subr.mxu0 0.0
    %936 = vmatpush2.msra.mxu0 0.0
    %937 = vmatprep.subr.mxu0 0.0
    %938 = vmatpush2.msra.mxu0 0.0
    %939 = vmatprep.mubr.f32.mxu0 0.0
    %v940 = vand.u32 %v668, 4294901760
    %v941 = vsub.f32 %v668, %v940
    %942 = vmatmul.mubr.f32.gmra.mxu0 %v941
    %v943 = vpop.f32.mrf.mxu0
    %v944 = vadd.f32 %v856, %v943
    %v945 = vpop.f32.mrf.mxu0
    %946 = vmatprep.mubr.f32.mxu0 0.0
    %v947 = vand.u32 %v671, 4294901760
    %v948 = vsub.f32 %v671, %v947
    %949 = vmatmul.mubr.f32.gmra.mxu0 %v948
    %v950 = vpop.f32.mrf.mxu0
    %v951 = vadd.f32 %v862, %v950
    %v952 = vpop.f32.mrf.mxu0
    %953 = vdwg.mxu0
    %954 = vmatprep.subr.mxu0 0.0
    %955 = vmatpush1.msra.mxu0 0.0
    %956 = vmatprep.subr.mxu0 0.0
    %957 = vmatpush1.msra.mxu0 0.0
    %958 = vmatprep.subr.mxu0 0.0
    %959 = vmatpush1.msra.mxu0 0.0
    %960 = vmatprep.subr.mxu0 0.0
    %961 = vmatpush1.msra.mxu0 0.0
    %962 = vmatprep.subr.mxu0 0.0
    %963 = vmatpush1.msra.mxu0 0.0
    %964 = vmatprep.subr.mxu0 0.0
    %965 = vmatpush1.msra.mxu0 0.0
    %966 = vmatprep.subr.mxu0 0.0
    %967 = vmatpush1.msra.mxu0 0.0
    %968 = vmatprep.subr.mxu0 0.0
    %969 = vmatpush1.msra.mxu0 0.0
    %970 = vmatprep.subr.mxu0 0.0
    %971 = vmatpush1.msra.mxu0 0.0
    %972 = vmatprep.subr.mxu0 0.0
    %973 = vmatpush1.msra.mxu0 0.0
    %974 = vmatprep.subr.mxu0 0.0
    %975 = vmatpush1.msra.mxu0 0.0
    %976 = vmatprep.subr.mxu0 0.0
    %v977 = vand.u32 %v124, 4294901760
    %978 = vmatpush1.msra.mxu0 %v977
    %979 = vmatprep.subr.mxu0 0.0
    %v980 = vand.u32 %v113, 4294901760
    %981 = vmatpush1.msra.mxu0 %v980
    %982 = vmatprep.subr.mxu0 0.0
    %v983 = vand.u32 %v112, 4294901760
    %984 = vmatpush1.msra.mxu0 %v983
    %985 = vmatprep.subr.mxu0 0.0
    %v986 = vand.u32 %v111, 4294901760
    %987 = vmatpush1.msra.mxu0 %v986
    %988 = vmatprep.subr.mxu0 0.0
    %v989 = vand.u32 %v110, 4294901760
    %990 = vmatpush1.msra.mxu0 %v989
    %991 = vmatprep.subr.mxu0 0.0
    %992 = vmatpush2.msra.mxu0 0.0
    %993 = vmatprep.subr.mxu0 0.0
    %994 = vmatpush2.msra.mxu0 0.0
    %995 = vmatprep.subr.mxu0 0.0
    %996 = vmatpush2.msra.mxu0 0.0
    %997 = vmatprep.subr.mxu0 0.0
    %998 = vmatpush2.msra.mxu0 0.0
    %999 = vmatprep.subr.mxu0 0.0
    %1000 = vmatpush2.msra.mxu0 0.0
    %1001 = vmatprep.subr.mxu0 0.0
    %1002 = vmatpush2.msra.mxu0 0.0
    %1003 = vmatprep.subr.mxu0 0.0
    %1004 = vmatpush2.msra.mxu0 0.0
    %1005 = vmatprep.subr.mxu0 0.0
    %1006 = vmatpush2.msra.mxu0 0.0
    %1007 = vmatprep.subr.mxu0 0.0
    %1008 = vmatpush2.msra.mxu0 0.0
    %1009 = vmatprep.subr.mxu0 0.0
    %1010 = vmatpush2.msra.mxu0 0.0
    %1011 = vmatprep.subr.mxu0 0.0
    %1012 = vmatpush2.msra.mxu0 0.0
    %1013 = vmatprep.subr.mxu0 0.0
    %1014 = vmatpush2.msra.mxu0 0.0
    %1015 = vmatprep.subr.mxu0 0.0
    %1016 = vmatpush2.msra.mxu0 0.0
    %1017 = vmatprep.subr.mxu0 0.0
    %1018 = vmatpush2.msra.mxu0 0.0
    %1019 = vmatprep.subr.mxu0 0.0
    %1020 = vmatpush2.msra.mxu0 0.0
    %1021 = vmatprep.subr.mxu0 0.0
    %1022 = vmatpush2.msra.mxu0 0.0
    %1023 = vmatprep.mubr.f32.mxu0 0.0
    %v1024 = vand.u32 %v668, 4294901760
    %v1025 = vsub.f32 %v668, %v1024
    %v1026 = vand.u32 %v1025, 4294901760
    %1027 = vmatmul.mubr.f32.gmra.mxu0 %v1026
    %v1028 = vpop.f32.mrf.mxu0
    %v1029 = vadd.f32 %v944, %v1028
    %v1030 = vpop.f32.mrf.mxu0
    %1031 = vmatprep.mubr.f32.mxu0 0.0
    %v1032 = vand.u32 %v671, 4294901760
    %v1033 = vsub.f32 %v671, %v1032
    %v1034 = vand.u32 %v1033, 4294901760
    %1035 = vmatmul.mubr.f32.gmra.mxu0 %v1034
    %v1036 = vpop.f32.mrf.mxu0
    %v1037 = vadd.f32 %v951, %v1036
    %v1038 = vpop.f32.mrf.mxu0
    %1039 = vdwg.mxu0
    %1040 = vmatprep.subr.mxu0 0.0
    %1041 = vmatpush1.msra.mxu0 0.0
    %1042 = vmatprep.subr.mxu0 0.0
    %1043 = vmatpush1.msra.mxu0 0.0
    %1044 = vmatprep.subr.mxu0 0.0
    %1045 = vmatpush1.msra.mxu0 0.0
    %1046 = vmatprep.subr.mxu0 0.0
    %1047 = vmatpush1.msra.mxu0 0.0
    %1048 = vmatprep.subr.mxu0 0.0
    %1049 = vmatpush1.msra.mxu0 0.0
    %1050 = vmatprep.subr.mxu0 0.0
    %1051 = vmatpush1.msra.mxu0 0.0
    %1052 = vmatprep.subr.mxu0 0.0
    %1053 = vmatpush1.msra.mxu0 0.0
    %1054 = vmatprep.subr.mxu0 0.0
    %1055 = vmatpush1.msra.mxu0 0.0
    %1056 = vmatprep.subr.mxu0 0.0
    %1057 = vmatpush1.msra.mxu0 0.0
    %1058 = vmatprep.subr.mxu0 0.0
    %1059 = vmatpush1.msra.mxu0 0.0
    %1060 = vmatprep.subr.mxu0 0.0
    %1061 = vmatpush1.msra.mxu0 0.0
    %1062 = vmatprep.subr.mxu0 0.0
    %v1063 = vand.u32 %v124, 4294901760
    %v1064 = vsub.f32 %v124, %v1063
    %v1065 = vand.u32 %v1064, 4294901760
    %1066 = vmatpush1.msra.mxu0 %v1065
    %1067 = vmatprep.subr.mxu0 0.0
    %v1068 = vand.u32 %v113, 4294901760
    %v1069 = vsub.f32 %v113, %v1068
    %v1070 = vand.u32 %v1069, 4294901760
    %1071 = vmatpush1.msra.mxu0 %v1070
    %1072 = vmatprep.subr.mxu0 0.0
    %v1073 = vand.u32 %v112, 4294901760
    %v1074 = vsub.f32 %v112, %v1073
    %v1075 = vand.u32 %v1074, 4294901760
    %1076 = vmatpush1.msra.mxu0 %v1075
    %1077 = vmatprep.subr.mxu0 0.0
    %v1078 = vand.u32 %v111, 4294901760
    %v1079 = vsub.f32 %v111, %v1078
    %v1080 = vand.u32 %v1079, 4294901760
    %1081 = vmatpush1.msra.mxu0 %v1080
    %1082 = vmatprep.subr.mxu0 0.0
    %v1083 = vand.u32 %v110, 4294901760
    %v1084 = vsub.f32 %v110, %v1083
    %v1085 = vand.u32 %v1084, 4294901760
    %1086 = vmatpush1.msra.mxu0 %v1085
    %1087 = vmatprep.subr.mxu0 0.0
    %1088 = vmatpush2.msra.mxu0 0.0
    %1089 = vmatprep.subr.mxu0 0.0
    %1090 = vmatpush2.msra.mxu0 0.0
    %1091 = vmatprep.subr.mxu0 0.0
    %1092 = vmatpush2.msra.mxu0 0.0
    %1093 = vmatprep.subr.mxu0 0.0
    %1094 = vmatpush2.msra.mxu0 0.0
    %1095 = vmatprep.subr.mxu0 0.0
    %1096 = vmatpush2.msra.mxu0 0.0
    %1097 = vmatprep.subr.mxu0 0.0
    %1098 = vmatpush2.msra.mxu0 0.0
    %1099 = vmatprep.subr.mxu0 0.0
    %1100 = vmatpush2.msra.mxu0 0.0
    %1101 = vmatprep.subr.mxu0 0.0
    %1102 = vmatpush2.msra.mxu0 0.0
    %1103 = vmatprep.subr.mxu0 0.0
    %1104 = vmatpush2.msra.mxu0 0.0
    %1105 = vmatprep.subr.mxu0 0.0
    %1106 = vmatpush2.msra.mxu0 0.0
    %1107 = vmatprep.subr.mxu0 0.0
    %1108 = vmatpush2.msra.mxu0 0.0
    %1109 = vmatprep.subr.mxu0 0.0
    %1110 = vmatpush2.msra.mxu0 0.0
    %1111 = vmatprep.subr.mxu0 0.0
    %1112 = vmatpush2.msra.mxu0 0.0
    %1113 = vmatprep.subr.mxu0 0.0
    %1114 = vmatpush2.msra.mxu0 0.0
    %1115 = vmatprep.subr.mxu0 0.0
    %1116 = vmatpush2.msra.mxu0 0.0
    %1117 = vmatprep.subr.mxu0 0.0
    %1118 = vmatpush2.msra.mxu0 0.0
    %1119 = vmatprep.mubr.f32.mxu0 0.0
    %v1120 = vand.u32 %v668, 4294901760
    %1121 = vmatmul.mubr.f32.gmra.mxu0 %v1120
    %v1122 = vpop.f32.mrf.mxu0
    %v1123 = vadd.f32 %v1029, %v1122
    %v1124 = vpop.f32.mrf.mxu0
    %1125 = vmatprep.mubr.f32.mxu0 0.0
    %v1126 = vand.u32 %v671, 4294901760
    %1127 = vmatmul.mubr.f32.gmra.mxu0 %v1126
    %v1128 = vpop.f32.mrf.mxu0
    %v1129 = vadd.f32 %v1037, %v1128
    %v1130 = vpop.f32.mrf.mxu0
    %1131 = vdwg.mxu0
    %1132 = vmatprep.subr.mxu0 0.0
    %1133 = vmatpush1.msra.mxu0 0.0
    %1134 = vmatprep.subr.mxu0 0.0
    %1135 = vmatpush1.msra.mxu0 0.0
    %1136 = vmatprep.subr.mxu0 0.0
    %1137 = vmatpush1.msra.mxu0 0.0
    %1138 = vmatprep.subr.mxu0 0.0
    %1139 = vmatpush1.msra.mxu0 0.0
    %1140 = vmatprep.subr.mxu0 0.0
    %1141 = vmatpush1.msra.mxu0 0.0
    %1142 = vmatprep.subr.mxu0 0.0
    %1143 = vmatpush1.msra.mxu0 0.0
    %1144 = vmatprep.subr.mxu0 0.0
    %1145 = vmatpush1.msra.mxu0 0.0
    %1146 = vmatprep.subr.mxu0 0.0
    %1147 = vmatpush1.msra.mxu0 0.0
    %1148 = vmatprep.subr.mxu0 0.0
    %1149 = vmatpush1.msra.mxu0 0.0
    %1150 = vmatprep.subr.mxu0 0.0
    %1151 = vmatpush1.msra.mxu0 0.0
    %1152 = vmatprep.subr.mxu0 0.0
    %1153 = vmatpush1.msra.mxu0 0.0
    %1154 = vmatprep.subr.mxu0 0.0
    %v1155 = vand.u32 %v124, 4294901760
    %1156 = vmatpush1.msra.mxu0 %v1155
    %1157 = vmatprep.subr.mxu0 0.0
    %v1158 = vand.u32 %v113, 4294901760
    %1159 = vmatpush1.msra.mxu0 %v1158
    %1160 = vmatprep.subr.mxu0 0.0
    %v1161 = vand.u32 %v112, 4294901760
    %1162 = vmatpush1.msra.mxu0 %v1161
    %1163 = vmatprep.subr.mxu0 0.0
    %v1164 = vand.u32 %v111, 4294901760
    %1165 = vmatpush1.msra.mxu0 %v1164
    %1166 = vmatprep.subr.mxu0 0.0
    %v1167 = vand.u32 %v110, 4294901760
    %1168 = vmatpush1.msra.mxu0 %v1167
    %1169 = vmatprep.subr.mxu0 0.0
    %1170 = vmatpush2.msra.mxu0 0.0
    %1171 = vmatprep.subr.mxu0 0.0
    %1172 = vmatpush2.msra.mxu0 0.0
    %1173 = vmatprep.subr.mxu0 0.0
    %1174 = vmatpush2.msra.mxu0 0.0
    %1175 = vmatprep.subr.mxu0 0.0
    %1176 = vmatpush2.msra.mxu0 0.0
    %1177 = vmatprep.subr.mxu0 0.0
    %1178 = vmatpush2.msra.mxu0 0.0
    %1179 = vmatprep.subr.mxu0 0.0
    %1180 = vmatpush2.msra.mxu0 0.0
    %1181 = vmatprep.subr.mxu0 0.0
    %1182 = vmatpush2.msra.mxu0 0.0
    %1183 = vmatprep.subr.mxu0 0.0
    %1184 = vmatpush2.msra.mxu0 0.0
    %1185 = vmatprep.subr.mxu0 0.0
    %1186 = vmatpush2.msra.mxu0 0.0
    %1187 = vmatprep.subr.mxu0 0.0
    %1188 = vmatpush2.msra.mxu0 0.0
    %1189 = vmatprep.subr.mxu0 0.0
    %1190 = vmatpush2.msra.mxu0 0.0
    %1191 = vmatprep.subr.mxu0 0.0
    %1192 = vmatpush2.msra.mxu0 0.0
    %1193 = vmatprep.subr.mxu0 0.0
    %1194 = vmatpush2.msra.mxu0 0.0
    %1195 = vmatprep.subr.mxu0 0.0
    %1196 = vmatpush2.msra.mxu0 0.0
    %1197 = vmatprep.subr.mxu0 0.0
    %1198 = vmatpush2.msra.mxu0 0.0
    %1199 = vmatprep.subr.mxu0 0.0
    %1200 = vmatpush2.msra.mxu0 0.0
    %1201 = vmatprep.mubr.f32.mxu0 0.0
    %v1202 = vand.u32 %v668, 4294901760
    %1203 = vmatmul.mubr.f32.gmra.mxu0 %v1202
    %v1204 = vpop.f32.mrf.mxu0
    %v1205 = vadd.f32 %v1123, %v1204
    %v1206 = vpop.f32.mrf.mxu0
    %1207 = vmatprep.mubr.f32.mxu0 0.0
    %v1208 = vand.u32 %v671, 4294901760
    %1209 = vmatmul.mubr.f32.gmra.mxu0 %v1208
    %v1210 = vpop.f32.mrf.mxu0
    %v1211 = vadd.f32 %v1129, %v1210
    %v1212 = vpop.f32.mrf.mxu0
    %1213 = vdwg.mxu0
    %v1214 = vrsqrt.pop %v658
    %v1215 = vmul.f32 %v658, %v1214
    %vm1216 = vcmp.eq.f32.partialorder %v658, inf
    %v1217 = vsel %vm1216, %v658, %v1215
    %vm1218 = vcmp.eq.f32.partialorder %v658, 0.0
    %v1219 = vand.u32 %v658, 2147483648
    %v1220 = vsel %vm1218, %v1219, %v1217
    %v1221 = vrsqrt.pop %v664
    %v1222 = vmul.f32 %v664, %v1221
    %vm1223 = vcmp.eq.f32.partialorder %v664, inf
    %v1224 = vsel %vm1223, %v664, %v1222
    %vm1225 = vcmp.eq.f32.partialorder %v664, 0.0
    %v1226 = vand.u32 %v664, 2147483648
    %v1227 = vsel %vm1225, %v1226, %v1224
    %v1228 = vrsqrt.pop %v1205
    %v1229 = vmul.f32 %v1205, %v1228
    %vm1230 = vcmp.eq.f32.partialorder %v1205, inf
    %v1231 = vsel %vm1230, %v1205, %v1229
    %vm1232 = vcmp.eq.f32.partialorder %v1205, 0.0
    %v1233 = vand.u32 %v1205, 2147483648
    %v1234 = vsel %vm1232, %v1233, %v1231
    %v1235 = vrsqrt.pop %v1211
    %v1236 = vmul.f32 %v1211, %v1235
    %vm1237 = vcmp.eq.f32.partialorder %v1211, inf
    %v1238 = vsel %vm1237, %v1211, %v1236
    %vm1239 = vcmp.eq.f32.partialorder %v1211, 0.0
    %v1240 = vand.u32 %v1211, 2147483648
    %v1241 = vsel %vm1239, %v1240, %v1238
    %1242 = vadd.xlane.f32.xlu0 %v1220
    %v1243 = vpop.xlane.xlu0 %1242
    %1244 = vadd.xlane.f32.xlu0 %v1227
    %v1245 = vpop.xlane.xlu0 %1244
    %1246 = vadd.xlane.f32.xlu0 %v1234
    %v1247 = vpop.xlane.xlu0 %1246
    %1248 = vadd.xlane.f32.xlu0 %v1241
    %v1249 = vpop.xlane.xlu0 %1248
    %v1250 = vld [vmem:[%s2] sm:$0x3]
    %v1251 = vlaneseq
    %v1252 = vand.u32 %v1251, 127
    %vm1253 = vcmp.eq.s32.totalorder %v1252, 0
    %s1254 = scalar_select %p70, 1, 0
    %v1255 = vstv %s1254
    %vm1256 = vcmp.eq.s32.totalorder %v1255, 1
    %vm1257 = vmand %vm1256, %vm1253
    %v1258 = vsel %vm1257, 0.0, %v1250
    %v1259 = vld [vmem:[#allocation3] sm:$0x3]
    %v1261 = vlaneseq
    %v1262 = vshrl.u32 %v1261, 7
    %v1263 = vsub.s32 0, %v1262
    %v1264 = vrot.slane %v1258, %v1263
    %1266 = vbcast.lane.b32.xlu0 %v1264, 256
    %v1267 = vpop.permute.xlu0 %1266
    %s1269 = sor.u32 256, 8
    %1270 = vbcast.lane.b32.xlu0 %v1264, %s1269
    %v1271 = vpop.permute.xlu0 %1270
    %v1272 = vlaneseq
    %v1273 = vshrl.u32 %v1272, 7
    %v1274 = vsub.s32 1, %v1273
    %v1275 = vrot.slane %v1258, %v1274
    %1277 = vbcast.lane.b32.xlu0 %v1275, 256
    %v1278 = vpop.permute.xlu0 %1277
    %s1280 = sor.u32 256, 8
    %1281 = vbcast.lane.b32.xlu0 %v1275, %s1280
    %v1282 = vpop.permute.xlu0 %1281
    %v1287 = vmul.f32 %v1243, %v1267
    %v1288 = vmul.f32 %v1245, %v1271
    %v1289 = vmul.f32 %v1247, %v1278
    %v1290 = vmul.f32 %v1249, %v1282
    %1295 = vset.pattern.permute.xlu0 0
    %1296 = vperm.xlu0 %1295, %v1287
    %v1297 = vpop.permute.xlu0 %1296
    %1298 = vset.pattern.permute.xlu0 0
    %1299 = vperm.xlu0 %1298, %v1288
    %v1300 = vpop.permute.xlu0 %1299
    %1301 = vset.pattern.permute.xlu0 0
    %1302 = vperm.xlu0 %1301, %v1289
    %v1303 = vpop.permute.xlu0 %1302
    %1304 = vset.pattern.permute.xlu0 0
    %1305 = vperm.xlu0 %1304, %v1290
    %v1306 = vpop.permute.xlu0 %1305
    %v1307 = vlaneseq
    %v1308 = vshrl.u32 %v1307, 7
    %v1309 = vsub.s32 %v1252, %v1308
    %v1310 = vrot.slane %v1297, %v1309
    %v1311 = vadd.s32 %v1252, 4294967288
    %v1312 = vlaneseq
    %v1313 = vshrl.u32 %v1312, 7
    %v1314 = vsub.s32 %v1311, %v1313
    %v1315 = vrot.slane %v1300, %v1314
    %vm1316 = vcmask 130112
    %v1317 = vsel %vm1316, %v1315, %v1310
    %v1318 = vlaneseq
    %v1319 = vshrl.u32 %v1318, 7
    %v1320 = vsub.s32 %v1252, %v1319
    %v1321 = vrot.slane %v1303, %v1320
    %v1322 = vlaneseq
    %v1323 = vshrl.u32 %v1322, 7
    %v1324 = vsub.s32 %v1311, %v1323
    %v1325 = vrot.slane %v1306, %v1324
    %v1326 = vsel %vm1316, %v1325, %v1321
    %vm1327 = vcmask 1041409
    %v1328 = vsel %vm1327, %v1326, %v1317
    %vm1330 = vcmask 123904
    %v1331 = vsel %vm1330, %v1328, 0.0
    %1332 = vadd.xlane.f32.xlu0 %v1331
    %v1333 = vpop.xlane.xlu0 %1332
    %v1334 = vadd.f32 %v1259, %v1333
    %vm1335 = vcmask 1024
    %1336 = vst.msk [vmem:[#allocation3] sm:$0x3] %vm1335, %v1334
    %v1337 = vld [vmem:[#allocation4] sm:$0x3]
    %v1338 = vsel %vm1330, %v1258, 0.0
    %1339 = vadd.xlane.f32.xlu0 %v1338
    %v1340 = vpop.xlane.xlu0 %1339
    %v1341 = vadd.f32 %v1337, %v1340
    %1342 = vst.msk [vmem:[#allocation4] sm:$0x3] %vm1335, %v1341
    // Predicated region
    $region34: #{tpu_custom_call.1} parent=1 // pred_check
      %p1343 = pneg %p70
    $region35: #{tpu_custom_call.1} parent=1 // pred_check_branch
      %1345 = sbr.rel (%p1343) target = $region37
    $region36: #{tpu_custom_call.1} parent=1 // pred_region
      %v1346 = vld [vmem:[#allocation3] sm:$0x3]
      %v1347 = vld [vmem:[#allocation4] sm:$0x3]
      %v1348 = vrcp.pop %v1347
      %v1349 = vmul.f32 %v1346, %v1348
      %1350 = vst.msk [vmem:[%s4] sm:$0x3] %vm1335, %v1349
    $region37: #{tpu_custom_call.1} parent=1 // pred_fallthru
      _
    // Predicated region
    $region38: #{tpu_custom_call.1} parent=1 // pred_check
      _
    $region39: #{tpu_custom_call.1} parent=1 // pred_check_branch
      %1352 = sbr.rel (0) target = $region41
    $region40: #{tpu_custom_call.1} parent=1 // pred_region
      _
    $region41: #{tpu_custom_call.1} parent=1 // pred_fallthru
      _
    // Predicated region
    $region42: #{tpu_custom_call.1} parent=1 // pred_check
      _
    $region43: #{tpu_custom_call.1} parent=1 // pred_check_branch
      %1354 = sbr.rel (0) target = $region45
    $region44: #{tpu_custom_call.1} parent=1 // pred_region
      _
    $region45: #{tpu_custom_call.1} parent=1 // pred_fallthru
      _
    %1355 = vsyncpa [#allocation6], 1
    %1356 = vsyncpa [#allocation8], 1

</llo_original>
